<compile_context>
chip_gen: v7x
topology: tpu7x:2x2x1
jax: 0.10.0
libtpu: 0.0.40
codegen_flags: <defaults>
</compile_context>

<pallas_src>
import functools
import math

import jax
import jax.numpy as jnp
from jax.experimental import pallas as pl
from jax.experimental.pallas import tpu as pltpu

EPS = 1e-5
_VMEM_LIMIT = 32 * 1024 * 1024       # safe on v5e/v6e (128 MiB) and v7x (64 MiB)
_TILE_BUDGET = 12 * 1024 * 1024      # cap on (weight + lhs) double-buffered tiles


def _round_up(x, m):
    return (x + m - 1) // m * m


# ----------------------------------------------------------------------------
# Pallas kernel: tiled matmul (optionally multi-tap shifted-window conv) with
# fused BN scale/shift + activation epilogue.
#   lhs/rhs tiles are bf16 (MXU native); accumulation and epilogue are f32.
#   `shifts` folds the kh-taps of a stride-1 3x3 conv into the kernel: tap t
#   reads lhs rows [shifts[t], shifts[t]+tm) of the row-haloed lhs block.
# ----------------------------------------------------------------------------
def _mm_bn_act_kernel(x_ref, w_ref, scale_ref, shift_ref, o_ref, acc_ref, *,
                      shifts, tm, act):
    kk = pl.program_id(2)

    @pl.when(kk == 0)
    def _():
        acc_ref[...] = jnp.zeros_like(acc_ref)

    for t, sh in enumerate(shifts):
        acc_ref[...] += jnp.dot(x_ref[pl.ds(sh, tm), :], w_ref[t],
                                preferred_element_type=jnp.float32)

    @pl.when(kk == pl.num_programs(2) - 1)
    def _():
        y = acc_ref[...] * scale_ref[...] + shift_ref[...]
        if act == "mish":
            # mish(y) = y * tanh(softplus(y)) = y * (u^2 - 1) / (u^2 + 1), u = 1 + e^y
            u = 1.0 + jnp.exp(jnp.minimum(y, 25.0))
            u2 = u * u
            y = y * (u2 - 1.0) * pl.reciprocal(u2 + 1.0, approx=True)
        elif act == "sigmoid":
            z = jnp.exp(jnp.minimum(-y, 30.0))
            y = pl.reciprocal(1.0 + z, approx=True)
        # act == "none": identity
        o_ref[...] = y.astype(o_ref.dtype)


@functools.lru_cache(maxsize=None)
def _build_fused(m_rows, Kp, Np, T, shifts, tm, tk, tn, act, out_dtype):
    kernel = functools.partial(_mm_bn_act_kernel, shifts=shifts, tm=tm, act=act)
    x_blk_rows = tm + max(shifts)
    return pl.pallas_call(
        kernel,
        out_shape=jax.ShapeDtypeStruct((m_rows, Np), out_dtype),
        grid_spec=pltpu.PrefetchScalarGridSpec(
            num_scalar_prefetch=0,
            grid=(m_rows // tm, Np // tn, Kp // tk),
            in_specs=[
                pl.BlockSpec((x_blk_rows, tk), lambda i, j, k: (i, k)),
                pl.BlockSpec((T, tk, tn), lambda i, j, k: (0, k, j)),
                pl.BlockSpec((1, tn), lambda i, j, k: (0, j)),
                pl.BlockSpec((1, tn), lambda i, j, k: (0, j)),
            ],
            out_specs=pl.BlockSpec((tm, tn), lambda i, j, k: (i, j)),
            scratch_shapes=[pltpu.VMEM((tm, tn), jnp.float32)],
        ),
        compiler_params=pltpu.CompilerParams(
            dimension_semantics=("parallel", "parallel", "arbitrary"),
            vmem_limit_bytes=_VMEM_LIMIT),
    )


def _pick_tn(Np):
    # Prefer 256 (matches 256-wide MXU) while keeping >=2 parallel N blocks.
    if Np % 256 == 0 and Np >= 512:
        return 256
    return 128


def _pick_tk(Kp, T, tn, x_rows):
    # Largest 128-multiple divisor of Kp whose (weights + lhs) double-buffered
    # bf16 tiles fit the budget -> K usually collapses to a single grid step.
    q = Kp // 128
    for c in range(q, 0, -1):
        if q % c:
            continue
        tk = c * 128
        if (T * tk * tn + x_rows * tk) * 2 * 2 <= _TILE_BUDGET:
            return tk
    return 128


def _pick_tm(Mp, tk):
    if Mp * tk * 2 * 2 <= _TILE_BUDGET:
        return Mp
    for c in range(Mp // 8, 0, -1):
        t = c * 8
        if Mp % t:
            continue
        if t * tk * 2 * 2 <= _TILE_BUDGET:
            return t
    return 8


def fused_matmul_bn_act(x2, w_packed, scale_p, shift_p, shifts, out_rows, act,
                        out_dtype):
    """out[m] = act(scale * sum_t x2[m + shifts[t]] @ w_packed[t] + shift).

    x2: (rows, Kp) bf16; w_packed: (T, Kp, Np) bf16; scale/shift: (1, Np) f32.
    """
    x_rows, Kp = x2.shape
    T, _, Np = w_packed.shape
    max_shift = max(shifts)
    tn = _pick_tn(Np)
    tk = _pick_tk(Kp, T, tn, x_rows)
    if max_shift == 0:
        tm = _pick_tm(out_rows, tk)
    else:
        tm = out_rows  # single M block; halo rows live inside the same block
    assert out_rows % tm == 0 and (max_shift == 0 or out_rows == tm)
    fn = _build_fused(out_rows, Kp, Np, T, tuple(shifts), tm, tk, tn, act,
                      out_dtype)
    return fn(x2, w_packed, scale_p, shift_p)


# ----------------------------------------------------------------------------
# Conv / BN / act wrapper (layout glue in plain JAX, compute in Pallas)
# ----------------------------------------------------------------------------
def im2col(x, k, stride, pad):
    """x: NHWC -> (N, Ho, Wo, k*k*C), tap-major ordering (kh, kw, C)."""
    if k == 1 and stride == 1 and pad == 0:
        return x
    N, H, W, C = x.shape
    xp = jnp.pad(x, ((0, 0), (pad, pad), (pad, pad), (0, 0)))
    Ho = (H + 2 * pad - k) // stride + 1
    Wo = (W + 2 * pad - k) // stride + 1
    cols = []
    for di in range(k):
        for dj in range(k):
            cols.append(xp[:, di:di + stride * Ho:stride,
                           dj:dj + stride * Wo:stride, :])
    return jnp.concatenate(cols, axis=-1)


def conv_forward(x, p):
    """x: NHWC (f32 or bf16). Returns NHWC in p['out_dtype']."""
    k, s, pad, cout = p["k"], p["s"], p["pad"], p["cout"]
    N, H, W, C = x.shape
    x = x.astype(jnp.bfloat16)

    if k == 3 and s == 1 and pad == 1:
        # Direct conv: 3 kw-taps folded into channels (3x width-unfold in bf16),
        # 3 kh-taps folded into in-kernel shifted row windows (no 9x im2col).
        Cp = p["cin_padded"]
        Hp = H + 2
        Wop = _round_up(W, 16)      # keeps row shifts (16,128)-tile aligned
        xp = jnp.pad(x, ((0, 0), (1, 1), (1, 1), (0, Cp - C)))
        slabs = [jnp.pad(xp[:, :, dx:dx + W, :],
                         ((0, 0), (0, 0), (0, Wop - W), (0, 0)))
                 for dx in range(3)]
        xw = jnp.concatenate(slabs, axis=-1)            # (N, Hp, Wop, 3*Cp)
        m_out = N * Hp * Wop
        x2 = xw.reshape(m_out, 3 * Cp)
        x2 = jnp.pad(x2, ((0, 2 * Wop), (0, 0)))        # halo rows for kh shifts
        out2 = fused_matmul_bn_act(
            x2, p["w_packed"], p["scale_p"], p["shift_p"],
            (0, Wop, 2 * Wop), m_out, p["act"], p["out_dtype"])
        return out2.reshape(N, Hp, Wop, -1)[:, :H, :W, :cout]

    # 1x1 convs and strided 3x3 downsamples: (cheap) im2col + plain matmul.
    patches = im2col(x, k, s, pad)
    _, Ho, Wo, Kdim = patches.shape
    Kp = p["w_packed"].shape[1]
    M = N * Ho * Wo
    Mp = _round_up(M, 8)
    x2 = patches.reshape(M, Kdim)
    x2 = jnp.pad(x2, ((0, Mp - M), (0, Kp - Kdim)))
    out2 = fused_matmul_bn_act(
        x2, p["w_packed"], p["scale_p"], p["shift_p"],
        (0,), Mp, p["act"], p["out_dtype"])
    return out2[:M, :cout].reshape(N, Ho, Wo, cout)


def upsample2x(x):  # F.interpolate(scale_factor=(2,2)), mode='nearest'
    x = jnp.repeat(x, 2, axis=1)
    x = jnp.repeat(x, 2, axis=2)
    return x


def panet_block_forward(x, p):
    for cp in p["convs"]:
        x = conv_forward(x, cp)
    if p["sam_enabled"]:
        sam = conv_forward(x, p["sam"])
        x = conv_forward(x * sam, p["conv"])
    return x


# ----------------------------------------------------------------------------
# Deterministic parameter initialization (synthetic, no checkpoints).
# Weight packing / padding / BN folding done ONCE here (not in the fwd path).
# ----------------------------------------------------------------------------
class KeyGen:
    def __init__(self, key):
        self.key = key

    def __call__(self):
        self.key, sub = jax.random.split(self.key)
        return sub


def init_conv(kg, cin, cout, k, s, pad, act="mish", bn=True):
    fan = cin * k * k
    w = jax.random.normal(kg(), (k, k, cin, cout), jnp.float32) / math.sqrt(fan)
    b = 0.01 * jax.random.normal(kg(), (cout,), jnp.float32)
    if bn:
        gamma = 1.0 + 0.1 * jax.random.normal(kg(), (cout,), jnp.float32)
        beta = 0.05 * jax.random.normal(kg(), (cout,), jnp.float32)
        mean = 0.05 * jax.random.normal(kg(), (cout,), jnp.float32)
        var = 1.0 + 0.1 * jax.random.uniform(kg(), (cout,), jnp.float32)
        scale = gamma / jnp.sqrt(var + EPS)
        shift = (b - mean) * scale + beta
    else:
        scale = jnp.ones((cout,), jnp.float32)
        shift = b

    Np = _round_up(cout, 128)
    p = dict(k=k, s=s, pad=pad, act=act, cout=cout,
             out_dtype=jnp.float32 if act == "none" else jnp.bfloat16)
    if k == 3 and s == 1 and pad == 1:
        Cp = _round_up(cin, 128)
        wp = jnp.pad(w, ((0, 0), (0, 0), (0, Cp - cin), (0, Np - cout)))
        # per kh-tap weight: rows ordered (kw, cin_padded) -> matches width-unfold
        p["w_packed"] = wp.reshape(3, 3 * Cp, Np).astype(jnp.bfloat16)
        p["cin_padded"] = Cp
    else:
        Kdim = k * k * cin
        Kp = _round_up(Kdim, 128)
        w2 = w.reshape(Kdim, cout)
        w2 = jnp.pad(w2, ((0, Kp - Kdim), (0, Np - cout)))
        p["w_packed"] = w2[None].astype(jnp.bfloat16)
    p["scale_p"] = jnp.pad(scale, (0, Np - cout)).reshape(1, Np)
    p["shift_p"] = jnp.pad(shift, (0, Np - cout)).reshape(1, Np)
    return p


def init_panet_block(kg, in_c, sam_enabled=False):
    convs = [
        init_conv(kg, in_c, in_c // 2, 1, 1, 0),
        init_conv(kg, in_c // 2, in_c, 3, 1, 1),
        init_conv(kg, in_c, in_c // 2, 1, 1, 0),
        init_conv(kg, in_c // 2, in_c, 3, 1, 1),
    ]
    p = dict(sam_enabled=sam_enabled)
    if sam_enabled:
        p["convs"] = convs
        p["sam"] = init_conv(kg, in_c, in_c, 1, 1, 0, act="sigmoid")
        p["conv"] = init_conv(kg, in_c, in_c // 2, 1, 1, 0)
    else:
        convs.append(init_conv(kg, in_c, in_c // 2, 1, 1, 0))
        p["convs"] = convs
    return p


def init_panet(kg, classes=80, sam_enabled=False):
    no = (5 + classes) * 3
    P = {}
    P["layer_1"] = [init_conv(kg, 2048, 512, 1, 1, 0),
                    init_conv(kg, 512, 1024, 3, 1, 1),
                    init_conv(kg, 1024, 512, 1, 1, 0)]
    P["upsample_1"] = init_conv(kg, 512, 256, 1, 1, 0)
    P["pan_conv2"] = init_conv(kg, 512, 256, 1, 1, 0)
    P["layer_2"] = init_panet_block(kg, 512, False)
    P["upsample_2"] = init_conv(kg, 256, 128, 1, 1, 0)
    P["pan_conv1"] = init_conv(kg, 256, 128, 1, 1, 0)
    P["layer_3"] = init_panet_block(kg, 256, sam_enabled)
    P["yolo_52"] = [init_conv(kg, 128, 256, 3, 1, 1),
                    init_conv(kg, 256, no, 1, 1, 0, act="none", bn=False)]
    P["downsample_1"] = init_conv(kg, 128, 256, 3, 2, 1)
    P["layer_4"] = init_panet_block(kg, 512, sam_enabled)
    P["yolo_26"] = [init_conv(kg, 256, 512, 3, 1, 1),
                    init_conv(kg, 512, no, 1, 1, 0, act="none", bn=False)]
    P["downsample_2"] = init_conv(kg, 256, 512, 3, 2, 1)
    P["layer_5"] = init_panet_block(kg, 1024, sam_enabled)
    P["yolo_13"] = [init_conv(kg, 512, 1024, 3, 1, 1),
                    init_conv(kg, 1024, no, 1, 1, 0, act="none", bn=False)]
    return P


# ----------------------------------------------------------------------------
# PANet forward (mirrors the PyTorch module exactly; tensors are NHWC here)
# ----------------------------------------------------------------------------
def panet_forward(P, x, pan_1, pan_2):
    x_13 = x
    for cp in P["layer_1"]:
        x_13 = conv_forward(x_13, cp)
    x = upsample2x(conv_forward(x_13, P["upsample_1"]))
    pan_2 = conv_forward(pan_2, P["pan_conv2"])
    x_26 = panet_block_forward(jnp.concatenate([x, pan_2], axis=-1), P["layer_2"])
    x = upsample2x(conv_forward(x_26, P["upsample_2"]))
    pan_1 = conv_forward(pan_1, P["pan_conv1"])
    x_52 = panet_block_forward(jnp.concatenate([x, pan_1], axis=-1), P["layer_3"])
    x = conv_forward(x_52, P["downsample_1"])
    x_26 = panet_block_forward(jnp.concatenate([x, x_26], axis=-1), P["layer_4"])
    x = conv_forward(x_26, P["downsample_2"])
    x_13 = panet_block_forward(jnp.concatenate([x, x_13], axis=-1), P["layer_5"])

    pred_52 = x_52
    for cp in P["yolo_52"]:
        pred_52 = conv_forward(pred_52, cp)
    pred_26 = x_26
    for cp in P["yolo_26"]:
        pred_26 = conv_forward(pred_26, cp)
    pred_13 = x_13
    for cp in P["yolo_13"]:
        pred_13 = conv_forward(pred_13, cp)
    return pred_52, pred_26, pred_13


if __name__ == "__main__":
    root = jax.random.PRNGKey(0)
    k_params, k_x, k_p1, k_p2 = jax.random.split(root, 4)

    classes = 80
    params = init_panet(KeyGen(k_params), classes=classes, sam_enabled=False)

    # Small spatial sizes consistent with the module's pyramid (S, 2S, 4S).
    B, S = 1, 4
    # PyTorch-style NCHW inputs.
    x_nchw = jax.random.normal(k_x, (B, 2048, S, S), jnp.float32)
    pan_1_nchw = jax.random.normal(k_p1, (B, 256, 4 * S, 4 * S), jnp.float32)
    pan_2_nchw = jax.random.normal(k_p2, (B, 512, 2 * S, 2 * S), jnp.float32)

    # layout: transpose NCHW -> NHWC for the Pallas kernels.
    to_nhwc = lambda t: jnp.transpose(t, (0, 2, 3, 1))
    to_nchw = lambda t: jnp.transpose(t, (0, 3, 1, 2))

    p52, p26, p13 = panet_forward(params, to_nhwc(x_nchw),
                                  to_nhwc(pan_1_nchw), to_nhwc(pan_2_nchw))
    p52, p26, p13 = to_nchw(p52), to_nchw(p26), to_nchw(p13)

    jax.block_until_ready((p52, p26, p13))

    no = (5 + classes) * 3
    assert p52.shape == (B, no, 4 * S, 4 * S), p52.shape
    assert p26.shape == (B, no, 2 * S, 2 * S), p26.shape
    assert p13.shape == (B, no, S, S), p13.shape
    assert jnp.all(jnp.isfinite(p52)) and jnp.all(jnp.isfinite(p26)) \
        and jnp.all(jnp.isfinite(p13))
    print("KERNEL_OK")
</pallas_src>

<mosaic_0001>
module attributes {stable_mosaic.version = 11 : i64} {
  func.func @_mm_bn_act_kernel(%arg0: i32, %arg1: i32, %arg2: i32, %arg3: memref<16x2048xbf16, #tpu.memory_space<vmem>>, %arg4: memref<1x2048x256xbf16, #tpu.memory_space<vmem>>, %arg5: memref<1x256xf32, #tpu.memory_space<vmem>>, %arg6: memref<1x256xf32, #tpu.memory_space<vmem>>, %arg7: memref<16x256xbf16, #tpu.memory_space<vmem>>, %arg8: memref<16x256xf32, #tpu.memory_space<vmem>>) attributes {dimension_semantics = [#tpu.dimension_semantics<parallel>, #tpu.dimension_semantics<parallel>, #tpu.dimension_semantics<arbitrary>], iteration_bounds = array<i64: 1, 2, 1>, scalar_prefetch = 0 : i64, scratch_operands = 1 : i64, tpu.core_type = #tpu.core_type<tc>, window_params = [{transform_indices = @transform_0, window_bounds = array<i64: 16, 2048>}, {transform_indices = @transform_1, window_bounds = array<i64: 1, 2048, 256>}, {transform_indices = @transform_2, window_bounds = array<i64: 1, 256>}, {transform_indices = @transform_3, window_bounds = array<i64: 1, 256>}, {transform_indices = @transform_4, window_bounds = array<i64: 16, 256>}]} {
    %c0_i32 = arith.constant 0 : i32
    %0 = arith.cmpi eq, %arg2, %c0_i32 : i32
    %1 = arith.extui %0 : i1 to i32
    %c0_i32_0 = arith.constant 0 : i32
    %2 = arith.cmpi ne, %1, %c0_i32_0 : i32
    scf.if %2 {
      %cst_11 = arith.constant 0.000000e+00 : f32
      %13 = vector.broadcast %cst_11 : f32 to vector<16x256xf32>
      %c0_12 = arith.constant 0 : index
      %c0_13 = arith.constant 0 : index
      %14 = vector.load %arg8[%c0_12, %c0_13] : memref<16x256xf32, #tpu.memory_space<vmem>>, vector<16x256xf32>
      tpu.vector_store %arg8[%c0_12, %c0_13], %13 {strides = array<i32>} : memref<16x256xf32, #tpu.memory_space<vmem>>, vector<16x256xf32>,
    } else {
    }
    %c0 = arith.constant 0 : index
    %c0_1 = arith.constant 0 : index
    %3 = vector.load %arg8[%c0, %c0_1] : memref<16x256xf32, #tpu.memory_space<vmem>>, vector<16x256xf32>
    %c0_2 = arith.constant 0 : index
    %c0_3 = arith.constant 0 : index
    %4 = vector.load %arg3[%c0_2, %c0_3] : memref<16x2048xbf16, #tpu.memory_space<vmem>>, vector<16x2048xbf16>
    %c0_4 = arith.constant 0 : index
    %c0_5 = arith.constant 0 : index
    %c0_6 = arith.constant 0 : index
    %5 = vector.load %arg4[%c0_4, %c0_5, %c0_6] : memref<1x2048x256xbf16, #tpu.memory_space<vmem>>, vector<1x2048x256xbf16>
    %6 = vector.shape_cast %5 : vector<1x2048x256xbf16> to vector<2048x256xbf16>
    %cst = arith.constant dense<0.000000e+00> : vector<16x256xf32>
    %7 = tpu.matmul %4, %6, %cst {dimension_numbers = #tpu.dot_dimension_numbers<[1], [0], [0], [1], [0, 0, 1, 1], [], []>} : vector<16x2048xbf16>, vector<2048x256xbf16>, vector<16x256xf32> -> vector<16x256xf32>
    %8 = arith.addf %3, %7 : vector<16x256xf32>
    %c0_7 = arith.constant 0 : index
    %c0_8 = arith.constant 0 : index
    %9 = vector.load %arg8[%c0_7, %c0_8] : memref<16x256xf32, #tpu.memory_space<vmem>>, vector<16x256xf32>
    tpu.vector_store %arg8[%c0_7, %c0_8], %8 {strides = array<i32>} : memref<16x256xf32, #tpu.memory_space<vmem>>, vector<16x256xf32>,
    %c0_i32_9 = arith.constant 0 : i32
    %10 = arith.cmpi eq, %arg2, %c0_i32_9 : i32
    %11 = arith.extui %10 : i1 to i32
    %c0_i32_10 = arith.constant 0 : i32
    %12 = arith.cmpi ne, %11, %c0_i32_10 : i32
    scf.if %12 {
      %c0_11 = arith.constant 0 : index
      %c0_12 = arith.constant 0 : index
      %13 = vector.load %arg8[%c0_11, %c0_12] : memref<16x256xf32, #tpu.memory_space<vmem>>, vector<16x256xf32>
      %c0_13 = arith.constant 0 : index
      %c0_14 = arith.constant 0 : index
      %14 = vector.load %arg5[%c0_13, %c0_14] : memref<1x256xf32, #tpu.memory_space<vmem>>, vector<1x256xf32>
      %15 = vector.broadcast %14 : vector<1x256xf32> to vector<16x256xf32>
      %16 = arith.mulf %13, %15 : vector<16x256xf32>
      %c0_15 = arith.constant 0 : index
      %c0_16 = arith.constant 0 : index
      %17 = vector.load %arg6[%c0_15, %c0_16] : memref<1x256xf32, #tpu.memory_space<vmem>>, vector<1x256xf32>
      %18 = vector.broadcast %17 : vector<1x256xf32> to vector<16x256xf32>
      %19 = arith.addf %16, %18 : vector<16x256xf32>
      %cst_17 = arith.constant 2.500000e+01 : f32
      %20 = vector.broadcast %cst_17 : f32 to vector<16x256xf32>
      %21 = arith.minimumf %19, %20 : vector<16x256xf32>
      %22 = math.exp %21 : vector<16x256xf32>
      %cst_18 = arith.constant 1.000000e+00 : f32
      %23 = vector.broadcast %cst_18 : f32 to vector<16x256xf32>
      %24 = arith.addf %23, %22 : vector<16x256xf32>
      %25 = arith.mulf %24, %24 : vector<16x256xf32>
      %cst_19 = arith.constant 1.000000e+00 : f32
      %26 = vector.broadcast %cst_19 : f32 to vector<16x256xf32>
      %27 = arith.subf %25, %26 : vector<16x256xf32>
      %28 = arith.mulf %19, %27 : vector<16x256xf32>
      %cst_20 = arith.constant 1.000000e+00 : f32
      %29 = vector.broadcast %cst_20 : f32 to vector<16x256xf32>
      %30 = arith.addf %25, %29 : vector<16x256xf32>
      %31 = tpu.reciprocal %30 {approx = true} : vector<16x256xf32> -> vector<16x256xf32>
      %32 = arith.mulf %28, %31 : vector<16x256xf32>
      %33 = arith.truncf %32 : vector<16x256xf32> to vector<16x256xbf16>
      %c0_21 = arith.constant 0 : index
      %c0_22 = arith.constant 0 : index
      %34 = vector.load %arg7[%c0_21, %c0_22] : memref<16x256xbf16, #tpu.memory_space<vmem>>, vector<16x256xbf16>
      tpu.vector_store %arg7[%c0_21, %c0_22], %33 {strides = array<i32>} : memref<16x256xbf16, #tpu.memory_space<vmem>>, vector<16x256xbf16>,
    } else {
    }
    return
  }
  func.func @transform_0(%arg0: i32, %arg1: i32, %arg2: i32) -> (i32, i32) {
    %c0_i32 = arith.constant 0 : i32
    return %arg0, %arg2 : i32, i32
  }
  func.func @transform_1(%arg0: i32, %arg1: i32, %arg2: i32) -> (i32, i32, i32) {
    %c0_i32 = arith.constant 0 : i32
    %c0_i32_0 = arith.constant 0 : i32
    return %c0_i32, %arg2, %arg1 : i32, i32, i32
  }
  func.func @transform_2(%arg0: i32, %arg1: i32, %arg2: i32) -> (i32, i32) {
    %c0_i32 = arith.constant 0 : i32
    %c0_i32_0 = arith.constant 0 : i32
    return %c0_i32, %arg1 : i32, i32
  }
  func.func @transform_3(%arg0: i32, %arg1: i32, %arg2: i32) -> (i32, i32) {
    %c0_i32 = arith.constant 0 : i32
    %c0_i32_0 = arith.constant 0 : i32
    return %c0_i32, %arg1 : i32, i32
  }
  func.func @transform_4(%arg0: i32, %arg1: i32, %arg2: i32) -> (i32, i32) {
    %c0_i32 = arith.constant 0 : i32
    return %arg0, %arg1 : i32, i32
  }
}

</mosaic_0001>

<llo_original>
// kernel: tpu_custom_call.1
$region0: #{tpu_custom_call.1}
  #allocation0 [shape = 'u32[]', space=smem, size = 0x4, offset = 0x4, fixed_abs, tag = 'smem constant byte address 0x4 - core index']
  #allocation1 [shape = 'u32[144,128]{1,0:T(1,128)}', space=vmem, size = 0x12000, scoped, tag = 'internal scratch']
  #allocation2 [shape = 'f32[16,256]{1,0:T(8,128)}', space=vmem, size = 0x4000, scoped, tag = 'scratch operand']
  %s0 = inlined_call_operand.hbm [shape: bf16[16,2048], index: 0, kind: input, shape index: {}]
  %s1 = inlined_call_operand.hbm [shape: bf16[1,2048,512], index: 1, kind: input, shape index: {}]
  %s2 = inlined_call_operand.hbm [shape: f32[1,512], index: 2, kind: input, shape index: {}]
  %s3 = inlined_call_operand.hbm [shape: f32[1,512], index: 3, kind: input, shape index: {}]
  %s4 = inlined_call_operand.hbm [shape: bf16[16,512], index: 4, kind: output, shape index: {}]
  %s5 = sld [smem:[#allocation0]]
  $region73: #{tpu_custom_call.1} parent=0
    _
  %s7 = ssub.s32 1, %s5
  %s8 = scalar_select 0, %s7, %s5
  $region1: #{tpu_custom_call.1} parent=0
    #allocation3 [shape = 'u8[65536]{0}', space=vmem, size = 0x10000, scoped, tag = 'input window, operand 0, single buffered']
    #allocation4 [shape = 's32[2]{0}', space=sflag, size = 0x8, scoped, tag = 'scoped memory for tpu_custom_call.1']
    #allocation5 [shape = 's32[2]{0}', space=sflag, size = 0x8, scoped, tag = 'scoped memory for tpu_custom_call.1']
    #allocation6 [shape = 'u8[2097152]{0}', space=vmem, size = 0x200000, scoped, tag = 'input window, operand 1']
    #allocation7 [shape = 's32[2]{0}', space=sflag, size = 0x8, scoped, tag = 'scoped memory for tpu_custom_call.1']
    #allocation8 [shape = 'u8[2048]{0}', space=vmem, size = 0x800, scoped, tag = 'input window, operand 2']
    #allocation9 [shape = 'u8[2048]{0}', space=vmem, size = 0x800, scoped, tag = 'input window, operand 3']
    #allocation10 [shape = 's32[2]{0}', space=sflag, size = 0x8, scoped, tag = 'scoped memory for tpu_custom_call.1']
    #allocation11 [shape = 'u8[16384]{0}', space=vmem, size = 0x4000, scoped, tag = 'output window, operand 0']
    %9 = vsyncpa [#allocation4], 0
    %10 = vsyncpa [#allocation7], 0
    %s11 = scalar_lea.sflag [#allocation7], 1
    %12 = vsyncpa %s11, 0
    %13 = vsyncpa [#allocation10], 0
    %s14 = scalar_lea.sflag [#allocation10], 1
    %15 = vsyncpa %s14, 0
    %16 = vsyncpa [#allocation5], 0
    %s17 = scalar_lea.sflag [#allocation5], 1
    %18 = vsyncpa %s17, 0
    loop: start=0, step=1, limit=4
    $region2: #{tpu_custom_call.1} parent=1 // loop_pre_header
      _
    $region3: #{tpu_custom_call.1} parent=1 // loop_header
      %s20 = sphi 0, %s24
      %p21 = scmp.ge.s32.totalorder %s20, 4
      %s27 = sphi 0, %s46
      %s28 = sphi 0, %s42
      %s29 = sphi 0, %s38
      %s30 = sphi 0, %s27
      %s31 = sphi 0, %s28
      %s32 = sphi 0, %s29
      %s33 = sphi 0, %s30
      %s34 = sphi 0, %s31
      %s35 = sphi 0, %s32
      %s51 = sphi 0, %s53
      %s54 = sphi 0, %s51
      %s55 = sphi 0, %s54
      %s71 = sphi 0, %s55
      %s79 = sphi 0, %s81
      %s82 = sphi 0, %s79
      %s83 = sphi 0, %s82
      %s99 = sphi 0, %s83
      %s105 = sphi 0, %s107
      %s108 = sphi 0, %s105
      %s109 = sphi 0, %s108
      %s125 = sphi 0, %s109
      %s131 = sphi 0, %s133
      %s134 = sphi 0, %s131
      %s135 = sphi 0, %s134
      %s151 = sphi 0, %s135
      %s159 = sphi 0, %s161
      %s162 = sphi 0, %s159
      %s163 = sphi 0, %s162
      %s179 = sphi 0, %s163
    $region4: #{tpu_custom_call.1} parent=1 // loop_header_branch
      %23 = sbr.rel (%p21) target = $region8
    $region5: #{tpu_custom_call.1} parent=1 // loop_body
      %s25 = ssub.s32 %s20, 1
      %s26 = ssub.s32 %s20, 2
      %s36 = sadd.s32 1, %s29
      %p37 = scmp.ge.s32.totalorder %s36, 1
      %s38 = scalar_select %p37, 0, %s36
      %s39 = sadd.s32 1, %s28
      %s40 = scalar_select %p37, %s39, %s28
      %p41 = scmp.ge.s32.totalorder %s40, 2
      %s42 = scalar_select %p41, 0, %s40
      %s43 = sadd.s32 1, %s27
      %s44 = scalar_select %p41, %s43, %s27
      %p45 = scmp.ge.s32.totalorder %s44, 1
      %s46 = scalar_select %p45, 0, %s44
      %s47 = ssub.s32 %s27, %s46
      %s48 = ssub.s32 %s29, %s38
      %s49 = sor.u32 %s47, %s48
      %p50 = scmp.eq.s32.totalorder %s49, 0
      %s52 = sadd.s32 %s51, 1
      %s53 = scalar_select %p50, %s51, %s52
      %p56 = pneg %p50
      %p57 = scmp.eq.s32.totalorder %s20, 1
      %p58 = por %p56, %p57
      %p59 = scmp.ne.s32.totalorder %s51, %s54
      %p60 = scmp.eq.s32.totalorder %s20, 0
      %p61 = por %p59, %p60
      %p62 = scmp.ne.s32.totalorder %s51, %s54
      %p63 = scmp.eq.s32.totalorder %s25, 1
      %p64 = por %p62, %p63
      %p65 = scmp.ne.s32.totalorder %s54, %s55
      %p66 = scmp.eq.s32.totalorder %s25, 0
      %p67 = por %p65, %p66
      %p68 = scmp.ne.s32.totalorder %s54, %s55
      %p69 = scmp.eq.s32.totalorder %s26, 1
      %p70 = por %p68, %p69
      %p72 = scmp.ne.s32.totalorder %s55, %s71
      %p73 = scmp.eq.s32.totalorder %s26, 0
      %p74 = por %p72, %p73
      %s75 = ssub.s32 %s29, %s38
      %s76 = ssub.s32 %s28, %s42
      %s77 = sor.u32 %s75, %s76
      %p78 = scmp.eq.s32.totalorder %s77, 0
      %s80 = sadd.s32 %s79, 1
      %s81 = scalar_select %p78, %s79, %s80
      %p84 = pneg %p78
      %p85 = scmp.eq.s32.totalorder %s20, 1
      %p86 = por %p84, %p85
      %p87 = scmp.ne.s32.totalorder %s79, %s82
      %p88 = scmp.eq.s32.totalorder %s20, 0
      %p89 = por %p87, %p88
      %p90 = scmp.ne.s32.totalorder %s79, %s82
      %p91 = scmp.eq.s32.totalorder %s25, 1
      %p92 = por %p90, %p91
      %p93 = scmp.ne.s32.totalorder %s82, %s83
      %p94 = scmp.eq.s32.totalorder %s25, 0
      %p95 = por %p93, %p94
      %p96 = scmp.ne.s32.totalorder %s82, %s83
      %p97 = scmp.eq.s32.totalorder %s26, 1
      %p98 = por %p96, %p97
      %p100 = scmp.ne.s32.totalorder %s83, %s99
      %p101 = scmp.eq.s32.totalorder %s26, 0
      %p102 = por %p100, %p101
      %s103 = ssub.s32 %s28, %s42
      %p104 = scmp.eq.s32.totalorder %s103, 0
      %s106 = sadd.s32 %s105, 1
      %s107 = scalar_select %p104, %s105, %s106
      %p110 = pneg %p104
      %p111 = scmp.eq.s32.totalorder %s20, 1
      %p112 = por %p110, %p111
      %p113 = scmp.ne.s32.totalorder %s105, %s108
      %p114 = scmp.eq.s32.totalorder %s20, 0
      %p115 = por %p113, %p114
      %p116 = scmp.ne.s32.totalorder %s105, %s108
      %p117 = scmp.eq.s32.totalorder %s25, 1
      %p118 = por %p116, %p117
      %p119 = scmp.ne.s32.totalorder %s108, %s109
      %p120 = scmp.eq.s32.totalorder %s25, 0
      %p121 = por %p119, %p120
      %p122 = scmp.ne.s32.totalorder %s108, %s109
      %p123 = scmp.eq.s32.totalorder %s26, 1
      %p124 = por %p122, %p123
      %p126 = scmp.ne.s32.totalorder %s109, %s125
      %p127 = scmp.eq.s32.totalorder %s26, 0
      %p128 = por %p126, %p127
      %s129 = ssub.s32 %s28, %s42
      %p130 = scmp.eq.s32.totalorder %s129, 0
      %s132 = sadd.s32 %s131, 1
      %s133 = scalar_select %p130, %s131, %s132
      %p136 = pneg %p130
      %p137 = scmp.eq.s32.totalorder %s20, 1
      %p138 = por %p136, %p137
      %p139 = scmp.ne.s32.totalorder %s131, %s134
      %p140 = scmp.eq.s32.totalorder %s20, 0
      %p141 = por %p139, %p140
      %p142 = scmp.ne.s32.totalorder %s131, %s134
      %p143 = scmp.eq.s32.totalorder %s25, 1
      %p144 = por %p142, %p143
      %p145 = scmp.ne.s32.totalorder %s134, %s135
      %p146 = scmp.eq.s32.totalorder %s25, 0
      %p147 = por %p145, %p146
      %p148 = scmp.ne.s32.totalorder %s134, %s135
      %p149 = scmp.eq.s32.totalorder %s26, 1
      %p150 = por %p148, %p149
      %p152 = scmp.ne.s32.totalorder %s135, %s151
      %p153 = scmp.eq.s32.totalorder %s26, 0
      %p154 = por %p152, %p153
      %s155 = ssub.s32 %s27, %s46
      %s156 = ssub.s32 %s28, %s42
      %s157 = sor.u32 %s155, %s156
      %p158 = scmp.eq.s32.totalorder %s157, 0
      %s160 = sadd.s32 %s159, 1
      %s161 = scalar_select %p158, %s159, %s160
      %p164 = pneg %p158
      %p165 = scmp.eq.s32.totalorder %s20, 1
      %p166 = por %p164, %p165
      %p167 = scmp.ne.s32.totalorder %s159, %s162
      %p168 = scmp.eq.s32.totalorder %s20, 0
      %p169 = por %p167, %p168
      %p170 = scmp.ne.s32.totalorder %s159, %s162
      %p171 = scmp.eq.s32.totalorder %s25, 1
      %p172 = por %p170, %p171
      %p173 = scmp.ne.s32.totalorder %s162, %s163
      %p174 = scmp.eq.s32.totalorder %s25, 0
      %p175 = por %p173, %p174
      %p176 = scmp.ne.s32.totalorder %s162, %s163
      %p177 = scmp.eq.s32.totalorder %s26, 1
      %p178 = por %p176, %p177
      %p180 = scmp.ne.s32.totalorder %s163, %s179
      %p181 = scmp.eq.s32.totalorder %s26, 0
      %p182 = por %p180, %p181
      %p183 = scmp.le.s32.totalorder 1, %s20
      %p184 = scmp.lt.s32.totalorder %s20, 3
      %p185 = pnand %p183, %p184
      %p186 = pneg %p185
      // Predicated region
      $region9: #{tpu_custom_call.1} parent=5 // pred_check
        _
      $region10: #{tpu_custom_call.1} parent=5 // pred_check_branch
        %188 = sbr.rel (%p185) target = $region12
      $region11: #{tpu_custom_call.1} parent=5 // pred_region
        %s189 = ssub.s32 %s20, 1
        // Predicated region
        $region13: #{tpu_custom_call.1} parent=11 // pred_check
          %p190 = pneg %p67
        $region14: #{tpu_custom_call.1} parent=11 // pred_check_branch
          %192 = sbr.rel (%p190) target = $region16
        $region15: #{tpu_custom_call.1} parent=11 // pred_region
          %s193 = smul.u32 2, %s30
          %s194 = smul.u32 16, %s32
          %s196 = ssub.s32 2048, 2048
          %197 = vsyncadd [#allocation4], %s196
          %s198 = smul.addr %s193, 16
          %s199 = sadd.s32 %s194, %s198
          %s200 = smul.addr %s199, 64
          %s201 = scalar_lea.hbm %s0, %s200
          %s202 = sshll.u32 [#allocation3], 4
          %s203 = int_to_ptr.vmem [resolvable:$true] %s202
          %208 = dma.hbm_to_vmem [thread:$0]  %s201, 2048, %s203, [#allocation4], 1024, 1024, 64
        $region16: #{tpu_custom_call.1} parent=11 // pred_fallthru
          _
      $region12: #{tpu_custom_call.1} parent=5 // pred_fallthru
        _
      %p209 = scmp.lt.s32.totalorder %s20, 2
      // Predicated region
      $region17: #{tpu_custom_call.1} parent=5 // pred_check
        %p210 = pneg %p209
      $region18: #{tpu_custom_call.1} parent=5 // pred_check_branch
        %212 = sbr.rel (%p210) target = $region20
      $region19: #{tpu_custom_call.1} parent=5 // pred_region
        // Predicated region
        $region21: #{tpu_custom_call.1} parent=19 // pred_check
          %p213 = pneg %p89
        $region22: #{tpu_custom_call.1} parent=19 // pred_check_branch
          %215 = sbr.rel (%p213) target = $region24
        $region23: #{tpu_custom_call.1} parent=19 // pred_region
          %s216 = sand.u32 %s20, 1
          %s217 = scalar_lea.sflag [#allocation7], %s216
          %s218 = sand.u32 %s79, 1
          %s219 = smul.addr %s218, 2048
          %s220 = scalar_lea.vmem [#allocation6], %s219
          %s221 = smul.u32 256, %s29
          %s222 = smul.u32 2, %s28
          %s224 = ssub.s32 32768, 32768
          %225 = vsyncadd %s217, %s224
          %s226 = smul.addr %s221, 4
          %s227 = sadd.s32 %s222, %s226
          %s228 = smul.addr %s227, 64
          %s229 = scalar_lea.hbm %s1, %s228
          %s230 = sshll.u32 %s220, 4
          %s231 = int_to_ptr.vmem [resolvable:$true] %s230
          %236 = dma.hbm_to_vmem [thread:$0]  %s229, 32768, %s231, %s217, 256, 128, 8
        $region24: #{tpu_custom_call.1} parent=19 // pred_fallthru
          _
        // Predicated region
        $region25: #{tpu_custom_call.1} parent=19 // pred_check
          %p237 = pneg %p115
        $region26: #{tpu_custom_call.1} parent=19 // pred_check_branch
          %239 = sbr.rel (%p237) target = $region28
        $region27: #{tpu_custom_call.1} parent=19 // pred_region
          %s240 = sand.u32 %s20, 1
          %s241 = scalar_lea.sflag [#allocation7], %s240
          %s242 = sand.u32 %s105, 1
          %s243 = smul.addr %s242, 2
          %s244 = scalar_lea.vmem [#allocation8], %s243
          %s245 = smul.u32 2, %s28
          %s247 = ssub.s32 32, 32
          %248 = vsyncadd %s241, %s247
          %s249 = smul.addr %s245, 16
          %s250 = scalar_lea.hbm %s2, %s249
          %s252 = sshll.u32 %s244, 4
          %s253 = int_to_ptr.vmem [resolvable:$true] %s252
          %255 = dma.hbm_to_vmem [thread:$0]  %s250, 32, %s253, %s241
        $region28: #{tpu_custom_call.1} parent=19 // pred_fallthru
          _
        // Predicated region
        $region29: #{tpu_custom_call.1} parent=19 // pred_check
          %p256 = pneg %p141
        $region30: #{tpu_custom_call.1} parent=19 // pred_check_branch
          %258 = sbr.rel (%p256) target = $region32
        $region31: #{tpu_custom_call.1} parent=19 // pred_region
          %s259 = sand.u32 %s131, 1
          %s260 = scalar_lea.sflag [#allocation10], %s259
          %s261 = sand.u32 %s131, 1
          %s262 = smul.addr %s261, 2
          %s263 = scalar_lea.vmem [#allocation9], %s262
          %s264 = smul.u32 2, %s28
          %s266 = ssub.s32 32, 32
          %267 = vsyncadd %s260, %s266
          %s268 = smul.addr %s264, 16
          %s269 = scalar_lea.hbm %s3, %s268
          %s271 = sshll.u32 %s263, 4
          %s272 = int_to_ptr.vmem [resolvable:$true] %s271
          %274 = dma.hbm_to_vmem [thread:$0]  %s269, 32, %s272, %s260
        $region32: #{tpu_custom_call.1} parent=19 // pred_fallthru
          _
      $region20: #{tpu_custom_call.1} parent=5 // pred_fallthru
        _
      %p275 = scmp.le.s32.totalorder 1, %s20
      %p276 = scmp.lt.s32.totalorder %s20, 3
      %p277 = pnand %p275, %p276
      %p278 = pneg %p277
      // Predicated region
      $region33: #{tpu_custom_call.1} parent=5 // pred_check
        _
      $region34: #{tpu_custom_call.1} parent=5 // pred_check_branch
        %280 = sbr.rel (%p277) target = $region36
      $region35: #{tpu_custom_call.1} parent=5 // pred_region
        %s281 = ssub.s32 %s20, 1
        // Predicated region
        $region37: #{tpu_custom_call.1} parent=35 // pred_check
          %p282 = pneg %p67
        $region38: #{tpu_custom_call.1} parent=35 // pred_check_branch
          %284 = sbr.rel (%p282) target = $region40
        $region39: #{tpu_custom_call.1} parent=35 // pred_region
          %285 = dma.done [#allocation4], 2048
        $region40: #{tpu_custom_call.1} parent=35 // pred_fallthru
          _
        %s286 = sand.u32 %s25, 1
        %s287 = scalar_lea.sflag [#allocation7], %s286
        %s288 = sand.u32 %s82, 1
        %s289 = smul.addr %s288, 2048
        %s290 = scalar_lea.vmem [#allocation6], %s289
        // Predicated region
        $region41: #{tpu_custom_call.1} parent=35 // pred_check
          %p291 = pneg %p95
        $region42: #{tpu_custom_call.1} parent=35 // pred_check_branch
          %293 = sbr.rel (%p291) target = $region44
        $region43: #{tpu_custom_call.1} parent=35 // pred_region
          %294 = dma.done %s287, 32768
        $region44: #{tpu_custom_call.1} parent=35 // pred_fallthru
          _
        %s295 = sand.u32 %s25, 1
        %s296 = scalar_lea.sflag [#allocation7], %s295
        %s297 = sand.u32 %s108, 1
        %s298 = smul.addr %s297, 2
        %s299 = scalar_lea.vmem [#allocation8], %s298
        // Predicated region
        $region45: #{tpu_custom_call.1} parent=35 // pred_check
          %p300 = pneg %p121
        $region46: #{tpu_custom_call.1} parent=35 // pred_check_branch
          %302 = sbr.rel (%p300) target = $region48
        $region47: #{tpu_custom_call.1} parent=35 // pred_region
          %303 = dma.done %s296, 32
        $region48: #{tpu_custom_call.1} parent=35 // pred_fallthru
          _
        %s304 = sand.u32 %s134, 1
        %s305 = scalar_lea.sflag [#allocation10], %s304
        %s306 = sand.u32 %s134, 1
        %s307 = smul.addr %s306, 2
        %s308 = scalar_lea.vmem [#allocation9], %s307
        // Predicated region
        $region49: #{tpu_custom_call.1} parent=35 // pred_check
          %p309 = pneg %p147
        $region50: #{tpu_custom_call.1} parent=35 // pred_check_branch
          %311 = sbr.rel (%p309) target = $region52
        $region51: #{tpu_custom_call.1} parent=35 // pred_region
          %312 = dma.done %s305, 32
        $region52: #{tpu_custom_call.1} parent=35 // pred_fallthru
          _
        %p313 = pneg %p67
        %p314 = pneg %p64
        %s315 = sand.u32 %s25, 1
        %s316 = scalar_lea.sflag [#allocation7], %s315
        %s317 = sand.u32 %s82, 1
        %s318 = smul.addr %s317, 2048
        %s319 = scalar_lea.vmem [#allocation6], %s318
        %p320 = pneg %p95
        %p321 = pneg %p92
        %s322 = sand.u32 %s25, 1
        %s323 = scalar_lea.sflag [#allocation7], %s322
        %s324 = sand.u32 %s108, 1
        %s325 = smul.addr %s324, 2
        %s326 = scalar_lea.vmem [#allocation8], %s325
        %p327 = pneg %p121
        %p328 = pneg %p118
        %s329 = sand.u32 %s134, 1
        %s330 = scalar_lea.sflag [#allocation10], %s329
        %s331 = sand.u32 %s134, 1
        %s332 = smul.addr %s331, 2
        %s333 = scalar_lea.vmem [#allocation9], %s332
        %p334 = pneg %p147
        %p335 = pneg %p144
        %p336 = pneg %p175
        %p337 = pneg %p172
        %s338 = sand.u32 %s162, 1
        %s339 = scalar_lea.sflag [#allocation5], %s338
        %s340 = sand.u32 %s162, 1
        %s341 = smul.addr %s340, 16
        %s342 = scalar_lea.vmem [#allocation11], %s341
        %s343 = smul.u32 2, %s30
        %s344 = smul.u32 16, %s32
        %s345 = smul.u32 256, %s32
        %s346 = smul.u32 2, %s31
        %s347 = smul.u32 2, %s31
        %s348 = smul.u32 2, %s31
        %s349 = smul.u32 2, %s30
        %s350 = smul.u32 2, %s31
        %p351 = scmp.eq.s32.totalorder %s32, 0
        // Predicated region
        $region53: #{tpu_custom_call.1} parent=35 // pred_check
          %p352 = pneg %p351
        $region54: #{tpu_custom_call.1} parent=35 // pred_check_branch
          %354 = sbr.rel (%p352) target = $region56
        $region55: #{tpu_custom_call.1} parent=35 // pred_region
          %355 = vst [vmem:[#allocation2] sm:$0xff] 0.0
          %356 = vst [vmem:[#allocation2 + $0x8] sm:$0xff] 0.0
          %357 = vst [vmem:[#allocation2 + $0x10] sm:$0xff] 0.0
          %358 = vst [vmem:[#allocation2 + $0x18] sm:$0xff] 0.0
        $region56: #{tpu_custom_call.1} parent=35 // pred_fallthru
          _
        %v359 = vld [vmem:[#allocation2] sm:$0xff]
        %v360 = vld [vmem:[#allocation2 + $0x8] sm:$0xff]
        %v361 = vld [vmem:[#allocation2 + $0x10] sm:$0xff]
        %v362 = vld [vmem:[#allocation2 + $0x18] sm:$0xff]
        %v363 = vld [vmem:[#allocation3] sm:$0xff]
        %v364 = vld [vmem:[#allocation3 + $0x8] sm:$0xff]
        %v365 = vld [vmem:[#allocation3 + $0x10] sm:$0xff]
        %v366 = vld [vmem:[#allocation3 + $0x18] sm:$0xff]
        %v367 = vld [vmem:[#allocation3 + $0x20] sm:$0xff]
        %v368 = vld [vmem:[#allocation3 + $0x28] sm:$0xff]
        %v369 = vld [vmem:[#allocation3 + $0x30] sm:$0xff]
        %v370 = vld [vmem:[#allocation3 + $0x38] sm:$0xff]
        %v371 = vld [vmem:[#allocation3 + $0x40] sm:$0xff]
        %v372 = vld [vmem:[#allocation3 + $0x48] sm:$0xff]
        %v373 = vld [vmem:[#allocation3 + $0x50] sm:$0xff]
        %v374 = vld [vmem:[#allocation3 + $0x58] sm:$0xff]
        %v375 = vld [vmem:[#allocation3 + $0x60] sm:$0xff]
        %v376 = vld [vmem:[#allocation3 + $0x68] sm:$0xff]
        %v377 = vld [vmem:[#allocation3 + $0x70] sm:$0xff]
        %v378 = vld [vmem:[#allocation3 + $0x78] sm:$0xff]
        %v379 = vld [vmem:[%s290] sm:$0xff]
        %v380 = vld [vmem:[%s290 + $0x8] sm:$0xff]
        %v381 = vld [vmem:[%s290 + $0x10] sm:$0xff]
        %v382 = vld [vmem:[%s290 + $0x18] sm:$0xff]
        %v383 = vld [vmem:[%s290 + $0x20] sm:$0xff]
        %v384 = vld [vmem:[%s290 + $0x28] sm:$0xff]
        %v385 = vld [vmem:[%s290 + $0x30] sm:$0xff]
        %v386 = vld [vmem:[%s290 + $0x38] sm:$0xff]
        %v387 = vld [vmem:[%s290 + $0x40] sm:$0xff]
        %v388 = vld [vmem:[%s290 + $0x48] sm:$0xff]
        %v389 = vld [vmem:[%s290 + $0x50] sm:$0xff]
        %v390 = vld [vmem:[%s290 + $0x58] sm:$0xff]
        %v391 = vld [vmem:[%s290 + $0x60] sm:$0xff]
        %v392 = vld [vmem:[%s290 + $0x68] sm:$0xff]
        %v393 = vld [vmem:[%s290 + $0x70] sm:$0xff]
        %v394 = vld [vmem:[%s290 + $0x78] sm:$0xff]
        %v395 = vld [vmem:[%s290 + $0x80] sm:$0xff]
        %v396 = vld [vmem:[%s290 + $0x88] sm:$0xff]
        %v397 = vld [vmem:[%s290 + $0x90] sm:$0xff]
        %v398 = vld [vmem:[%s290 + $0x98] sm:$0xff]
        %v399 = vld [vmem:[%s290 + $0xa0] sm:$0xff]
        %v400 = vld [vmem:[%s290 + $0xa8] sm:$0xff]
        %v401 = vld [vmem:[%s290 + $0xb0] sm:$0xff]
        %v402 = vld [vmem:[%s290 + $0xb8] sm:$0xff]
        %v403 = vld [vmem:[%s290 + $0xc0] sm:$0xff]
        %v404 = vld [vmem:[%s290 + $0xc8] sm:$0xff]
        %v405 = vld [vmem:[%s290 + $0xd0] sm:$0xff]
        %v406 = vld [vmem:[%s290 + $0xd8] sm:$0xff]
        %v407 = vld [vmem:[%s290 + $0xe0] sm:$0xff]
        %v408 = vld [vmem:[%s290 + $0xe8] sm:$0xff]
        %v409 = vld [vmem:[%s290 + $0xf0] sm:$0xff]
        %v410 = vld [vmem:[%s290 + $0xf8] sm:$0xff]
        %v411 = vld [vmem:[%s290 + $0x100] sm:$0xff]
        %v412 = vld [vmem:[%s290 + $0x108] sm:$0xff]
        %v413 = vld [vmem:[%s290 + $0x110] sm:$0xff]
        %v414 = vld [vmem:[%s290 + $0x118] sm:$0xff]
        %v415 = vld [vmem:[%s290 + $0x120] sm:$0xff]
        %v416 = vld [vmem:[%s290 + $0x128] sm:$0xff]
        %v417 = vld [vmem:[%s290 + $0x130] sm:$0xff]
        %v418 = vld [vmem:[%s290 + $0x138] sm:$0xff]
        %v419 = vld [vmem:[%s290 + $0x140] sm:$0xff]
        %v420 = vld [vmem:[%s290 + $0x148] sm:$0xff]
        %v421 = vld [vmem:[%s290 + $0x150] sm:$0xff]
        %v422 = vld [vmem:[%s290 + $0x158] sm:$0xff]
        %v423 = vld [vmem:[%s290 + $0x160] sm:$0xff]
        %v424 = vld [vmem:[%s290 + $0x168] sm:$0xff]
        %v425 = vld [vmem:[%s290 + $0x170] sm:$0xff]
        %v426 = vld [vmem:[%s290 + $0x178] sm:$0xff]
        %v427 = vld [vmem:[%s290 + $0x180] sm:$0xff]
        %v428 = vld [vmem:[%s290 + $0x188] sm:$0xff]
        %v429 = vld [vmem:[%s290 + $0x190] sm:$0xff]
        %v430 = vld [vmem:[%s290 + $0x198] sm:$0xff]
        %v431 = vld [vmem:[%s290 + $0x1a0] sm:$0xff]
        %v432 = vld [vmem:[%s290 + $0x1a8] sm:$0xff]
        %v433 = vld [vmem:[%s290 + $0x1b0] sm:$0xff]
        %v434 = vld [vmem:[%s290 + $0x1b8] sm:$0xff]
        %v435 = vld [vmem:[%s290 + $0x1c0] sm:$0xff]
        %v436 = vld [vmem:[%s290 + $0x1c8] sm:$0xff]
        %v437 = vld [vmem:[%s290 + $0x1d0] sm:$0xff]
        %v438 = vld [vmem:[%s290 + $0x1d8] sm:$0xff]
        %v439 = vld [vmem:[%s290 + $0x1e0] sm:$0xff]
        %v440 = vld [vmem:[%s290 + $0x1e8] sm:$0xff]
        %v441 = vld [vmem:[%s290 + $0x1f0] sm:$0xff]
        %v442 = vld [vmem:[%s290 + $0x1f8] sm:$0xff]
        %v443 = vld [vmem:[%s290 + $0x200] sm:$0xff]
        %v444 = vld [vmem:[%s290 + $0x208] sm:$0xff]
        %v445 = vld [vmem:[%s290 + $0x210] sm:$0xff]
        %v446 = vld [vmem:[%s290 + $0x218] sm:$0xff]
        %v447 = vld [vmem:[%s290 + $0x220] sm:$0xff]
        %v448 = vld [vmem:[%s290 + $0x228] sm:$0xff]
        %v449 = vld [vmem:[%s290 + $0x230] sm:$0xff]
        %v450 = vld [vmem:[%s290 + $0x238] sm:$0xff]
        %v451 = vld [vmem:[%s290 + $0x240] sm:$0xff]
        %v452 = vld [vmem:[%s290 + $0x248] sm:$0xff]
        %v453 = vld [vmem:[%s290 + $0x250] sm:$0xff]
        %v454 = vld [vmem:[%s290 + $0x258] sm:$0xff]
        %v455 = vld [vmem:[%s290 + $0x260] sm:$0xff]
        %v456 = vld [vmem:[%s290 + $0x268] sm:$0xff]
        %v457 = vld [vmem:[%s290 + $0x270] sm:$0xff]
        %v458 = vld [vmem:[%s290 + $0x278] sm:$0xff]
        %v459 = vld [vmem:[%s290 + $0x280] sm:$0xff]
        %v460 = vld [vmem:[%s290 + $0x288] sm:$0xff]
        %v461 = vld [vmem:[%s290 + $0x290] sm:$0xff]
        %v462 = vld [vmem:[%s290 + $0x298] sm:$0xff]
        %v463 = vld [vmem:[%s290 + $0x2a0] sm:$0xff]
        %v464 = vld [vmem:[%s290 + $0x2a8] sm:$0xff]
        %v465 = vld [vmem:[%s290 + $0x2b0] sm:$0xff]
        %v466 = vld [vmem:[%s290 + $0x2b8] sm:$0xff]
        %v467 = vld [vmem:[%s290 + $0x2c0] sm:$0xff]
        %v468 = vld [vmem:[%s290 + $0x2c8] sm:$0xff]
        %v469 = vld [vmem:[%s290 + $0x2d0] sm:$0xff]
        %v470 = vld [vmem:[%s290 + $0x2d8] sm:$0xff]
        %v471 = vld [vmem:[%s290 + $0x2e0] sm:$0xff]
        %v472 = vld [vmem:[%s290 + $0x2e8] sm:$0xff]
        %v473 = vld [vmem:[%s290 + $0x2f0] sm:$0xff]
        %v474 = vld [vmem:[%s290 + $0x2f8] sm:$0xff]
        %v475 = vld [vmem:[%s290 + $0x300] sm:$0xff]
        %v476 = vld [vmem:[%s290 + $0x308] sm:$0xff]
        %v477 = vld [vmem:[%s290 + $0x310] sm:$0xff]
        %v478 = vld [vmem:[%s290 + $0x318] sm:$0xff]
        %v479 = vld [vmem:[%s290 + $0x320] sm:$0xff]
        %v480 = vld [vmem:[%s290 + $0x328] sm:$0xff]
        %v481 = vld [vmem:[%s290 + $0x330] sm:$0xff]
        %v482 = vld [vmem:[%s290 + $0x338] sm:$0xff]
        %v483 = vld [vmem:[%s290 + $0x340] sm:$0xff]
        %v484 = vld [vmem:[%s290 + $0x348] sm:$0xff]
        %v485 = vld [vmem:[%s290 + $0x350] sm:$0xff]
        %v486 = vld [vmem:[%s290 + $0x358] sm:$0xff]
        %v487 = vld [vmem:[%s290 + $0x360] sm:$0xff]
        %v488 = vld [vmem:[%s290 + $0x368] sm:$0xff]
        %v489 = vld [vmem:[%s290 + $0x370] sm:$0xff]
        %v490 = vld [vmem:[%s290 + $0x378] sm:$0xff]
        %v491 = vld [vmem:[%s290 + $0x380] sm:$0xff]
        %v492 = vld [vmem:[%s290 + $0x388] sm:$0xff]
        %v493 = vld [vmem:[%s290 + $0x390] sm:$0xff]
        %v494 = vld [vmem:[%s290 + $0x398] sm:$0xff]
        %v495 = vld [vmem:[%s290 + $0x3a0] sm:$0xff]
        %v496 = vld [vmem:[%s290 + $0x3a8] sm:$0xff]
        %v497 = vld [vmem:[%s290 + $0x3b0] sm:$0xff]
        %v498 = vld [vmem:[%s290 + $0x3b8] sm:$0xff]
        %v499 = vld [vmem:[%s290 + $0x3c0] sm:$0xff]
        %v500 = vld [vmem:[%s290 + $0x3c8] sm:$0xff]
        %v501 = vld [vmem:[%s290 + $0x3d0] sm:$0xff]
        %v502 = vld [vmem:[%s290 + $0x3d8] sm:$0xff]
        %v503 = vld [vmem:[%s290 + $0x3e0] sm:$0xff]
        %v504 = vld [vmem:[%s290 + $0x3e8] sm:$0xff]
        %v505 = vld [vmem:[%s290 + $0x3f0] sm:$0xff]
        %v506 = vld [vmem:[%s290 + $0x3f8] sm:$0xff]
        %v507 = vld [vmem:[%s290 + $0x400] sm:$0xff]
        %v508 = vld [vmem:[%s290 + $0x408] sm:$0xff]
        %v509 = vld [vmem:[%s290 + $0x410] sm:$0xff]
        %v510 = vld [vmem:[%s290 + $0x418] sm:$0xff]
        %v511 = vld [vmem:[%s290 + $0x420] sm:$0xff]
        %v512 = vld [vmem:[%s290 + $0x428] sm:$0xff]
        %v513 = vld [vmem:[%s290 + $0x430] sm:$0xff]
        %v514 = vld [vmem:[%s290 + $0x438] sm:$0xff]
        %v515 = vld [vmem:[%s290 + $0x440] sm:$0xff]
        %v516 = vld [vmem:[%s290 + $0x448] sm:$0xff]
        %v517 = vld [vmem:[%s290 + $0x450] sm:$0xff]
        %v518 = vld [vmem:[%s290 + $0x458] sm:$0xff]
        %v519 = vld [vmem:[%s290 + $0x460] sm:$0xff]
        %v520 = vld [vmem:[%s290 + $0x468] sm:$0xff]
        %v521 = vld [vmem:[%s290 + $0x470] sm:$0xff]
        %v522 = vld [vmem:[%s290 + $0x478] sm:$0xff]
        %v523 = vld [vmem:[%s290 + $0x480] sm:$0xff]
        %v524 = vld [vmem:[%s290 + $0x488] sm:$0xff]
        %v525 = vld [vmem:[%s290 + $0x490] sm:$0xff]
        %v526 = vld [vmem:[%s290 + $0x498] sm:$0xff]
        %v527 = vld [vmem:[%s290 + $0x4a0] sm:$0xff]
        %v528 = vld [vmem:[%s290 + $0x4a8] sm:$0xff]
        %v529 = vld [vmem:[%s290 + $0x4b0] sm:$0xff]
        %v530 = vld [vmem:[%s290 + $0x4b8] sm:$0xff]
        %v531 = vld [vmem:[%s290 + $0x4c0] sm:$0xff]
        %v532 = vld [vmem:[%s290 + $0x4c8] sm:$0xff]
        %v533 = vld [vmem:[%s290 + $0x4d0] sm:$0xff]
        %v534 = vld [vmem:[%s290 + $0x4d8] sm:$0xff]
        %v535 = vld [vmem:[%s290 + $0x4e0] sm:$0xff]
        %v536 = vld [vmem:[%s290 + $0x4e8] sm:$0xff]
        %v537 = vld [vmem:[%s290 + $0x4f0] sm:$0xff]
        %v538 = vld [vmem:[%s290 + $0x4f8] sm:$0xff]
        %v539 = vld [vmem:[%s290 + $0x500] sm:$0xff]
        %v540 = vld [vmem:[%s290 + $0x508] sm:$0xff]
        %v541 = vld [vmem:[%s290 + $0x510] sm:$0xff]
        %v542 = vld [vmem:[%s290 + $0x518] sm:$0xff]
        %v543 = vld [vmem:[%s290 + $0x520] sm:$0xff]
        %v544 = vld [vmem:[%s290 + $0x528] sm:$0xff]
        %v545 = vld [vmem:[%s290 + $0x530] sm:$0xff]
        %v546 = vld [vmem:[%s290 + $0x538] sm:$0xff]
        %v547 = vld [vmem:[%s290 + $0x540] sm:$0xff]
        %v548 = vld [vmem:[%s290 + $0x548] sm:$0xff]
        %v549 = vld [vmem:[%s290 + $0x550] sm:$0xff]
        %v550 = vld [vmem:[%s290 + $0x558] sm:$0xff]
        %v551 = vld [vmem:[%s290 + $0x560] sm:$0xff]
        %v552 = vld [vmem:[%s290 + $0x568] sm:$0xff]
        %v553 = vld [vmem:[%s290 + $0x570] sm:$0xff]
        %v554 = vld [vmem:[%s290 + $0x578] sm:$0xff]
        %v555 = vld [vmem:[%s290 + $0x580] sm:$0xff]
        %v556 = vld [vmem:[%s290 + $0x588] sm:$0xff]
        %v557 = vld [vmem:[%s290 + $0x590] sm:$0xff]
        %v558 = vld [vmem:[%s290 + $0x598] sm:$0xff]
        %v559 = vld [vmem:[%s290 + $0x5a0] sm:$0xff]
        %v560 = vld [vmem:[%s290 + $0x5a8] sm:$0xff]
        %v561 = vld [vmem:[%s290 + $0x5b0] sm:$0xff]
        %v562 = vld [vmem:[%s290 + $0x5b8] sm:$0xff]
        %v563 = vld [vmem:[%s290 + $0x5c0] sm:$0xff]
        %v564 = vld [vmem:[%s290 + $0x5c8] sm:$0xff]
        %v565 = vld [vmem:[%s290 + $0x5d0] sm:$0xff]
        %v566 = vld [vmem:[%s290 + $0x5d8] sm:$0xff]
        %v567 = vld [vmem:[%s290 + $0x5e0] sm:$0xff]
        %v568 = vld [vmem:[%s290 + $0x5e8] sm:$0xff]
        %v569 = vld [vmem:[%s290 + $0x5f0] sm:$0xff]
        %v570 = vld [vmem:[%s290 + $0x5f8] sm:$0xff]
        %v571 = vld [vmem:[%s290 + $0x600] sm:$0xff]
        %v572 = vld [vmem:[%s290 + $0x608] sm:$0xff]
        %v573 = vld [vmem:[%s290 + $0x610] sm:$0xff]
        %v574 = vld [vmem:[%s290 + $0x618] sm:$0xff]
        %v575 = vld [vmem:[%s290 + $0x620] sm:$0xff]
        %v576 = vld [vmem:[%s290 + $0x628] sm:$0xff]
        %v577 = vld [vmem:[%s290 + $0x630] sm:$0xff]
        %v578 = vld [vmem:[%s290 + $0x638] sm:$0xff]
        %v579 = vld [vmem:[%s290 + $0x640] sm:$0xff]
        %v580 = vld [vmem:[%s290 + $0x648] sm:$0xff]
        %v581 = vld [vmem:[%s290 + $0x650] sm:$0xff]
        %v582 = vld [vmem:[%s290 + $0x658] sm:$0xff]
        %v583 = vld [vmem:[%s290 + $0x660] sm:$0xff]
        %v584 = vld [vmem:[%s290 + $0x668] sm:$0xff]
        %v585 = vld [vmem:[%s290 + $0x670] sm:$0xff]
        %v586 = vld [vmem:[%s290 + $0x678] sm:$0xff]
        %v587 = vld [vmem:[%s290 + $0x680] sm:$0xff]
        %v588 = vld [vmem:[%s290 + $0x688] sm:$0xff]
        %v589 = vld [vmem:[%s290 + $0x690] sm:$0xff]
        %v590 = vld [vmem:[%s290 + $0x698] sm:$0xff]
        %v591 = vld [vmem:[%s290 + $0x6a0] sm:$0xff]
        %v592 = vld [vmem:[%s290 + $0x6a8] sm:$0xff]
        %v593 = vld [vmem:[%s290 + $0x6b0] sm:$0xff]
        %v594 = vld [vmem:[%s290 + $0x6b8] sm:$0xff]
        %v595 = vld [vmem:[%s290 + $0x6c0] sm:$0xff]
        %v596 = vld [vmem:[%s290 + $0x6c8] sm:$0xff]
        %v597 = vld [vmem:[%s290 + $0x6d0] sm:$0xff]
        %v598 = vld [vmem:[%s290 + $0x6d8] sm:$0xff]
        %v599 = vld [vmem:[%s290 + $0x6e0] sm:$0xff]
        %v600 = vld [vmem:[%s290 + $0x6e8] sm:$0xff]
        %v601 = vld [vmem:[%s290 + $0x6f0] sm:$0xff]
        %v602 = vld [vmem:[%s290 + $0x6f8] sm:$0xff]
        %v603 = vld [vmem:[%s290 + $0x700] sm:$0xff]
        %v604 = vld [vmem:[%s290 + $0x708] sm:$0xff]
        %v605 = vld [vmem:[%s290 + $0x710] sm:$0xff]
        %v606 = vld [vmem:[%s290 + $0x718] sm:$0xff]
        %v607 = vld [vmem:[%s290 + $0x720] sm:$0xff]
        %v608 = vld [vmem:[%s290 + $0x728] sm:$0xff]
        %v609 = vld [vmem:[%s290 + $0x730] sm:$0xff]
        %v610 = vld [vmem:[%s290 + $0x738] sm:$0xff]
        %v611 = vld [vmem:[%s290 + $0x740] sm:$0xff]
        %v612 = vld [vmem:[%s290 + $0x748] sm:$0xff]
        %v613 = vld [vmem:[%s290 + $0x750] sm:$0xff]
        %v614 = vld [vmem:[%s290 + $0x758] sm:$0xff]
        %v615 = vld [vmem:[%s290 + $0x760] sm:$0xff]
        %v616 = vld [vmem:[%s290 + $0x768] sm:$0xff]
        %v617 = vld [vmem:[%s290 + $0x770] sm:$0xff]
        %v618 = vld [vmem:[%s290 + $0x778] sm:$0xff]
        %v619 = vld [vmem:[%s290 + $0x780] sm:$0xff]
        %v620 = vld [vmem:[%s290 + $0x788] sm:$0xff]
        %v621 = vld [vmem:[%s290 + $0x790] sm:$0xff]
        %v622 = vld [vmem:[%s290 + $0x798] sm:$0xff]
        %v623 = vld [vmem:[%s290 + $0x7a0] sm:$0xff]
        %v624 = vld [vmem:[%s290 + $0x7a8] sm:$0xff]
        %v625 = vld [vmem:[%s290 + $0x7b0] sm:$0xff]
        %v626 = vld [vmem:[%s290 + $0x7b8] sm:$0xff]
        %v627 = vld [vmem:[%s290 + $0x7c0] sm:$0xff]
        %v628 = vld [vmem:[%s290 + $0x7c8] sm:$0xff]
        %v629 = vld [vmem:[%s290 + $0x7d0] sm:$0xff]
        %v630 = vld [vmem:[%s290 + $0x7d8] sm:$0xff]
        %v631 = vld [vmem:[%s290 + $0x7e0] sm:$0xff]
        %v632 = vld [vmem:[%s290 + $0x7e8] sm:$0xff]
        %v633 = vld [vmem:[%s290 + $0x7f0] sm:$0xff]
        %v634 = vld [vmem:[%s290 + $0x7f8] sm:$0xff]
        %v651 = vunpack.c.l.b16 %v363
        %v652 = vunpack.c.h.b16 %v363
        %v653 = vunpack.c.l.b16 %v364
        %v654 = vunpack.c.h.b16 %v364
        %v655 = vunpack.c.l.b16 %v365
        %v656 = vunpack.c.h.b16 %v365
        %v657 = vunpack.c.l.b16 %v366
        %v658 = vunpack.c.h.b16 %v366
        %v659 = vunpack.c.l.b16 %v367
        %v660 = vunpack.c.h.b16 %v367
        %v661 = vunpack.c.l.b16 %v368
        %v662 = vunpack.c.h.b16 %v368
        %v663 = vunpack.c.l.b16 %v369
        %v664 = vunpack.c.h.b16 %v369
        %v665 = vunpack.c.l.b16 %v370
        %v666 = vunpack.c.h.b16 %v370
        %v667 = vunpack.c.l.b16 %v371
        %v668 = vunpack.c.h.b16 %v371
        %v669 = vunpack.c.l.b16 %v372
        %v670 = vunpack.c.h.b16 %v372
        %v671 = vunpack.c.l.b16 %v373
        %v672 = vunpack.c.h.b16 %v373
        %v673 = vunpack.c.l.b16 %v374
        %v674 = vunpack.c.h.b16 %v374
        %v675 = vunpack.c.l.b16 %v375
        %v676 = vunpack.c.h.b16 %v375
        %v677 = vunpack.c.l.b16 %v376
        %v678 = vunpack.c.h.b16 %v376
        %v679 = vunpack.c.l.b16 %v377
        %v680 = vunpack.c.h.b16 %v377
        %v681 = vunpack.c.l.b16 %v378
        %v682 = vunpack.c.h.b16 %v378
        %v683 = vpack.c.b16 %v667, %v651
        %v684 = vpack.c.b16 %v668, %v652
        %v685 = vpack.c.b16 %v669, %v653
        %v686 = vpack.c.b16 %v670, %v654
        %v687 = vpack.c.b16 %v671, %v655
        %v688 = vpack.c.b16 %v672, %v656
        %v689 = vpack.c.b16 %v673, %v657
        %v690 = vpack.c.b16 %v674, %v658
        %v691 = vpack.c.b16 %v675, %v659
        %v692 = vpack.c.b16 %v676, %v660
        %v693 = vpack.c.b16 %v677, %v661
        %v694 = vpack.c.b16 %v678, %v662
        %v695 = vpack.c.b16 %v679, %v663
        %v696 = vpack.c.b16 %v680, %v664
        %v697 = vpack.c.b16 %v681, %v665
        %v698 = vpack.c.b16 %v682, %v666
        %v971 = vunpack.c.l.b16 %v379
        %v972 = vunpack.c.h.b16 %v379
        %v973 = vunpack.c.l.b16 %v380
        %v974 = vunpack.c.h.b16 %v380
        %v975 = vunpack.c.l.b16 %v381
        %v976 = vunpack.c.h.b16 %v381
        %v977 = vunpack.c.l.b16 %v382
        %v978 = vunpack.c.h.b16 %v382
        %v979 = vunpack.c.l.b16 %v383
        %v980 = vunpack.c.h.b16 %v383
        %v981 = vunpack.c.l.b16 %v384
        %v982 = vunpack.c.h.b16 %v384
        %v983 = vunpack.c.l.b16 %v385
        %v984 = vunpack.c.h.b16 %v385
        %v985 = vunpack.c.l.b16 %v386
        %v986 = vunpack.c.h.b16 %v386
        %v987 = vunpack.c.l.b16 %v387
        %v988 = vunpack.c.h.b16 %v387
        %v989 = vunpack.c.l.b16 %v388
        %v990 = vunpack.c.h.b16 %v388
        %v991 = vunpack.c.l.b16 %v389
        %v992 = vunpack.c.h.b16 %v389
        %v993 = vunpack.c.l.b16 %v390
        %v994 = vunpack.c.h.b16 %v390
        %v995 = vunpack.c.l.b16 %v391
        %v996 = vunpack.c.h.b16 %v391
        %v997 = vunpack.c.l.b16 %v392
        %v998 = vunpack.c.h.b16 %v392
        %v999 = vunpack.c.l.b16 %v393
        %v1000 = vunpack.c.h.b16 %v393
        %v1001 = vunpack.c.l.b16 %v394
        %v1002 = vunpack.c.h.b16 %v394
        %v1003 = vunpack.c.l.b16 %v395
        %v1004 = vunpack.c.h.b16 %v395
        %v1005 = vunpack.c.l.b16 %v396
        %v1006 = vunpack.c.h.b16 %v396
        %v1007 = vunpack.c.l.b16 %v397
        %v1008 = vunpack.c.h.b16 %v397
        %v1009 = vunpack.c.l.b16 %v398
        %v1010 = vunpack.c.h.b16 %v398
        %v1011 = vunpack.c.l.b16 %v399
        %v1012 = vunpack.c.h.b16 %v399
        %v1013 = vunpack.c.l.b16 %v400
        %v1014 = vunpack.c.h.b16 %v400
        %v1015 = vunpack.c.l.b16 %v401
        %v1016 = vunpack.c.h.b16 %v401
        %v1017 = vunpack.c.l.b16 %v402
        %v1018 = vunpack.c.h.b16 %v402
        %v1019 = vunpack.c.l.b16 %v403
        %v1020 = vunpack.c.h.b16 %v403
        %v1021 = vunpack.c.l.b16 %v404
        %v1022 = vunpack.c.h.b16 %v404
        %v1023 = vunpack.c.l.b16 %v405
        %v1024 = vunpack.c.h.b16 %v405
        %v1025 = vunpack.c.l.b16 %v406
        %v1026 = vunpack.c.h.b16 %v406
        %v1027 = vunpack.c.l.b16 %v407
        %v1028 = vunpack.c.h.b16 %v407
        %v1029 = vunpack.c.l.b16 %v408
        %v1030 = vunpack.c.h.b16 %v408
        %v1031 = vunpack.c.l.b16 %v409
        %v1032 = vunpack.c.h.b16 %v409
        %v1033 = vunpack.c.l.b16 %v410
        %v1034 = vunpack.c.h.b16 %v410
        %v1035 = vunpack.c.l.b16 %v411
        %v1036 = vunpack.c.h.b16 %v411
        %v1037 = vunpack.c.l.b16 %v412
        %v1038 = vunpack.c.h.b16 %v412
        %v1039 = vunpack.c.l.b16 %v413
        %v1040 = vunpack.c.h.b16 %v413
        %v1041 = vunpack.c.l.b16 %v414
        %v1042 = vunpack.c.h.b16 %v414
        %v1043 = vunpack.c.l.b16 %v415
        %v1044 = vunpack.c.h.b16 %v415
        %v1045 = vunpack.c.l.b16 %v416
        %v1046 = vunpack.c.h.b16 %v416
        %v1047 = vunpack.c.l.b16 %v417
        %v1048 = vunpack.c.h.b16 %v417
        %v1049 = vunpack.c.l.b16 %v418
        %v1050 = vunpack.c.h.b16 %v418
        %v1051 = vunpack.c.l.b16 %v419
        %v1052 = vunpack.c.h.b16 %v419
        %v1053 = vunpack.c.l.b16 %v420
        %v1054 = vunpack.c.h.b16 %v420
        %v1055 = vunpack.c.l.b16 %v421
        %v1056 = vunpack.c.h.b16 %v421
        %v1057 = vunpack.c.l.b16 %v422
        %v1058 = vunpack.c.h.b16 %v422
        %v1059 = vunpack.c.l.b16 %v423
        %v1060 = vunpack.c.h.b16 %v423
        %v1061 = vunpack.c.l.b16 %v424
        %v1062 = vunpack.c.h.b16 %v424
        %v1063 = vunpack.c.l.b16 %v425
        %v1064 = vunpack.c.h.b16 %v425
        %v1065 = vunpack.c.l.b16 %v426
        %v1066 = vunpack.c.h.b16 %v426
        %v1067 = vunpack.c.l.b16 %v427
        %v1068 = vunpack.c.h.b16 %v427
        %v1069 = vunpack.c.l.b16 %v428
        %v1070 = vunpack.c.h.b16 %v428
        %v1071 = vunpack.c.l.b16 %v429
        %v1072 = vunpack.c.h.b16 %v429
        %v1073 = vunpack.c.l.b16 %v430
        %v1074 = vunpack.c.h.b16 %v430
        %v1075 = vunpack.c.l.b16 %v431
        %v1076 = vunpack.c.h.b16 %v431
        %v1077 = vunpack.c.l.b16 %v432
        %v1078 = vunpack.c.h.b16 %v432
        %v1079 = vunpack.c.l.b16 %v433
        %v1080 = vunpack.c.h.b16 %v433
        %v1081 = vunpack.c.l.b16 %v434
        %v1082 = vunpack.c.h.b16 %v434
        %v1083 = vunpack.c.l.b16 %v435
        %v1084 = vunpack.c.h.b16 %v435
        %v1085 = vunpack.c.l.b16 %v436
        %v1086 = vunpack.c.h.b16 %v436
        %v1087 = vunpack.c.l.b16 %v437
        %v1088 = vunpack.c.h.b16 %v437
        %v1089 = vunpack.c.l.b16 %v438
        %v1090 = vunpack.c.h.b16 %v438
        %v1091 = vunpack.c.l.b16 %v439
        %v1092 = vunpack.c.h.b16 %v439
        %v1093 = vunpack.c.l.b16 %v440
        %v1094 = vunpack.c.h.b16 %v440
        %v1095 = vunpack.c.l.b16 %v441
        %v1096 = vunpack.c.h.b16 %v441
        %v1097 = vunpack.c.l.b16 %v442
        %v1098 = vunpack.c.h.b16 %v442
        %v1099 = vunpack.c.l.b16 %v443
        %v1100 = vunpack.c.h.b16 %v443
        %v1101 = vunpack.c.l.b16 %v444
        %v1102 = vunpack.c.h.b16 %v444
        %v1103 = vunpack.c.l.b16 %v445
        %v1104 = vunpack.c.h.b16 %v445
        %v1105 = vunpack.c.l.b16 %v446
        %v1106 = vunpack.c.h.b16 %v446
        %v1107 = vunpack.c.l.b16 %v447
        %v1108 = vunpack.c.h.b16 %v447
        %v1109 = vunpack.c.l.b16 %v448
        %v1110 = vunpack.c.h.b16 %v448
        %v1111 = vunpack.c.l.b16 %v449
        %v1112 = vunpack.c.h.b16 %v449
        %v1113 = vunpack.c.l.b16 %v450
        %v1114 = vunpack.c.h.b16 %v450
        %v1115 = vunpack.c.l.b16 %v451
        %v1116 = vunpack.c.h.b16 %v451
        %v1117 = vunpack.c.l.b16 %v452
        %v1118 = vunpack.c.h.b16 %v452
        %v1119 = vunpack.c.l.b16 %v453
        %v1120 = vunpack.c.h.b16 %v453
        %v1121 = vunpack.c.l.b16 %v454
        %v1122 = vunpack.c.h.b16 %v454
        %v1123 = vunpack.c.l.b16 %v455
        %v1124 = vunpack.c.h.b16 %v455
        %v1125 = vunpack.c.l.b16 %v456
        %v1126 = vunpack.c.h.b16 %v456
        %v1127 = vunpack.c.l.b16 %v457
        %v1128 = vunpack.c.h.b16 %v457
        %v1129 = vunpack.c.l.b16 %v458
        %v1130 = vunpack.c.h.b16 %v458
        %v1131 = vunpack.c.l.b16 %v459
        %v1132 = vunpack.c.h.b16 %v459
        %v1133 = vunpack.c.l.b16 %v460
        %v1134 = vunpack.c.h.b16 %v460
        %v1135 = vunpack.c.l.b16 %v461
        %v1136 = vunpack.c.h.b16 %v461
        %v1137 = vunpack.c.l.b16 %v462
        %v1138 = vunpack.c.h.b16 %v462
        %v1139 = vunpack.c.l.b16 %v463
        %v1140 = vunpack.c.h.b16 %v463
        %v1141 = vunpack.c.l.b16 %v464
        %v1142 = vunpack.c.h.b16 %v464
        %v1143 = vunpack.c.l.b16 %v465
        %v1144 = vunpack.c.h.b16 %v465
        %v1145 = vunpack.c.l.b16 %v466
        %v1146 = vunpack.c.h.b16 %v466
        %v1147 = vunpack.c.l.b16 %v467
        %v1148 = vunpack.c.h.b16 %v467
        %v1149 = vunpack.c.l.b16 %v468
        %v1150 = vunpack.c.h.b16 %v468
        %v1151 = vunpack.c.l.b16 %v469
        %v1152 = vunpack.c.h.b16 %v469
        %v1153 = vunpack.c.l.b16 %v470
        %v1154 = vunpack.c.h.b16 %v470
        %v1155 = vunpack.c.l.b16 %v471
        %v1156 = vunpack.c.h.b16 %v471
        %v1157 = vunpack.c.l.b16 %v472
        %v1158 = vunpack.c.h.b16 %v472
        %v1159 = vunpack.c.l.b16 %v473
        %v1160 = vunpack.c.h.b16 %v473
        %v1161 = vunpack.c.l.b16 %v474
        %v1162 = vunpack.c.h.b16 %v474
        %v1163 = vunpack.c.l.b16 %v475
        %v1164 = vunpack.c.h.b16 %v475
        %v1165 = vunpack.c.l.b16 %v476
        %v1166 = vunpack.c.h.b16 %v476
        %v1167 = vunpack.c.l.b16 %v477
        %v1168 = vunpack.c.h.b16 %v477
        %v1169 = vunpack.c.l.b16 %v478
        %v1170 = vunpack.c.h.b16 %v478
        %v1171 = vunpack.c.l.b16 %v479
        %v1172 = vunpack.c.h.b16 %v479
        %v1173 = vunpack.c.l.b16 %v480
        %v1174 = vunpack.c.h.b16 %v480
        %v1175 = vunpack.c.l.b16 %v481
        %v1176 = vunpack.c.h.b16 %v481
        %v1177 = vunpack.c.l.b16 %v482
        %v1178 = vunpack.c.h.b16 %v482
        %v1179 = vunpack.c.l.b16 %v483
        %v1180 = vunpack.c.h.b16 %v483
        %v1181 = vunpack.c.l.b16 %v484
        %v1182 = vunpack.c.h.b16 %v484
        %v1183 = vunpack.c.l.b16 %v485
        %v1184 = vunpack.c.h.b16 %v485
        %v1185 = vunpack.c.l.b16 %v486
        %v1186 = vunpack.c.h.b16 %v486
        %v1187 = vunpack.c.l.b16 %v487
        %v1188 = vunpack.c.h.b16 %v487
        %v1189 = vunpack.c.l.b16 %v488
        %v1190 = vunpack.c.h.b16 %v488
        %v1191 = vunpack.c.l.b16 %v489
        %v1192 = vunpack.c.h.b16 %v489
        %v1193 = vunpack.c.l.b16 %v490
        %v1194 = vunpack.c.h.b16 %v490
        %v1195 = vunpack.c.l.b16 %v491
        %v1196 = vunpack.c.h.b16 %v491
        %v1197 = vunpack.c.l.b16 %v492
        %v1198 = vunpack.c.h.b16 %v492
        %v1199 = vunpack.c.l.b16 %v493
        %v1200 = vunpack.c.h.b16 %v493
        %v1201 = vunpack.c.l.b16 %v494
        %v1202 = vunpack.c.h.b16 %v494
        %v1203 = vunpack.c.l.b16 %v495
        %v1204 = vunpack.c.h.b16 %v495
        %v1205 = vunpack.c.l.b16 %v496
        %v1206 = vunpack.c.h.b16 %v496
        %v1207 = vunpack.c.l.b16 %v497
        %v1208 = vunpack.c.h.b16 %v497
        %v1209 = vunpack.c.l.b16 %v498
        %v1210 = vunpack.c.h.b16 %v498
        %v1211 = vunpack.c.l.b16 %v499
        %v1212 = vunpack.c.h.b16 %v499
        %v1213 = vunpack.c.l.b16 %v500
        %v1214 = vunpack.c.h.b16 %v500
        %v1215 = vunpack.c.l.b16 %v501
        %v1216 = vunpack.c.h.b16 %v501
        %v1217 = vunpack.c.l.b16 %v502
        %v1218 = vunpack.c.h.b16 %v502
        %v1219 = vunpack.c.l.b16 %v503
        %v1220 = vunpack.c.h.b16 %v503
        %v1221 = vunpack.c.l.b16 %v504
        %v1222 = vunpack.c.h.b16 %v504
        %v1223 = vunpack.c.l.b16 %v505
        %v1224 = vunpack.c.h.b16 %v505
        %v1225 = vunpack.c.l.b16 %v506
        %v1226 = vunpack.c.h.b16 %v506
        %v1227 = vunpack.c.l.b16 %v507
        %v1228 = vunpack.c.h.b16 %v507
        %v1229 = vunpack.c.l.b16 %v508
        %v1230 = vunpack.c.h.b16 %v508
        %v1231 = vunpack.c.l.b16 %v509
        %v1232 = vunpack.c.h.b16 %v509
        %v1233 = vunpack.c.l.b16 %v510
        %v1234 = vunpack.c.h.b16 %v510
        %v1235 = vunpack.c.l.b16 %v511
        %v1236 = vunpack.c.h.b16 %v511
        %v1237 = vunpack.c.l.b16 %v512
        %v1238 = vunpack.c.h.b16 %v512
        %v1239 = vunpack.c.l.b16 %v513
        %v1240 = vunpack.c.h.b16 %v513
        %v1241 = vunpack.c.l.b16 %v514
        %v1242 = vunpack.c.h.b16 %v514
        %v1243 = vunpack.c.l.b16 %v515
        %v1244 = vunpack.c.h.b16 %v515
        %v1245 = vunpack.c.l.b16 %v516
        %v1246 = vunpack.c.h.b16 %v516
        %v1247 = vunpack.c.l.b16 %v517
        %v1248 = vunpack.c.h.b16 %v517
        %v1249 = vunpack.c.l.b16 %v518
        %v1250 = vunpack.c.h.b16 %v518
        %v1251 = vunpack.c.l.b16 %v519
        %v1252 = vunpack.c.h.b16 %v519
        %v1253 = vunpack.c.l.b16 %v520
        %v1254 = vunpack.c.h.b16 %v520
        %v1255 = vunpack.c.l.b16 %v521
        %v1256 = vunpack.c.h.b16 %v521
        %v1257 = vunpack.c.l.b16 %v522
        %v1258 = vunpack.c.h.b16 %v522
        %v1259 = vunpack.c.l.b16 %v523
        %v1260 = vunpack.c.h.b16 %v523
        %v1261 = vunpack.c.l.b16 %v524
        %v1262 = vunpack.c.h.b16 %v524
        %v1263 = vunpack.c.l.b16 %v525
        %v1264 = vunpack.c.h.b16 %v525
        %v1265 = vunpack.c.l.b16 %v526
        %v1266 = vunpack.c.h.b16 %v526
        %v1267 = vunpack.c.l.b16 %v527
        %v1268 = vunpack.c.h.b16 %v527
        %v1269 = vunpack.c.l.b16 %v528
        %v1270 = vunpack.c.h.b16 %v528
        %v1271 = vunpack.c.l.b16 %v529
        %v1272 = vunpack.c.h.b16 %v529
        %v1273 = vunpack.c.l.b16 %v530
        %v1274 = vunpack.c.h.b16 %v530
        %v1275 = vunpack.c.l.b16 %v531
        %v1276 = vunpack.c.h.b16 %v531
        %v1277 = vunpack.c.l.b16 %v532
        %v1278 = vunpack.c.h.b16 %v532
        %v1279 = vunpack.c.l.b16 %v533
        %v1280 = vunpack.c.h.b16 %v533
        %v1281 = vunpack.c.l.b16 %v534
        %v1282 = vunpack.c.h.b16 %v534
        %v1283 = vunpack.c.l.b16 %v535
        %v1284 = vunpack.c.h.b16 %v535
        %v1285 = vunpack.c.l.b16 %v536
        %v1286 = vunpack.c.h.b16 %v536
        %v1287 = vunpack.c.l.b16 %v537
        %v1288 = vunpack.c.h.b16 %v537
        %v1289 = vunpack.c.l.b16 %v538
        %v1290 = vunpack.c.h.b16 %v538
        %v1291 = vunpack.c.l.b16 %v539
        %v1292 = vunpack.c.h.b16 %v539
        %v1293 = vunpack.c.l.b16 %v540
        %v1294 = vunpack.c.h.b16 %v540
        %v1295 = vunpack.c.l.b16 %v541
        %v1296 = vunpack.c.h.b16 %v541
        %v1297 = vunpack.c.l.b16 %v542
        %v1298 = vunpack.c.h.b16 %v542
        %v1299 = vunpack.c.l.b16 %v543
        %v1300 = vunpack.c.h.b16 %v543
        %v1301 = vunpack.c.l.b16 %v544
        %v1302 = vunpack.c.h.b16 %v544
        %v1303 = vunpack.c.l.b16 %v545
        %v1304 = vunpack.c.h.b16 %v545
        %v1305 = vunpack.c.l.b16 %v546
        %v1306 = vunpack.c.h.b16 %v546
        %v1307 = vunpack.c.l.b16 %v547
        %v1308 = vunpack.c.h.b16 %v547
        %v1309 = vunpack.c.l.b16 %v548
        %v1310 = vunpack.c.h.b16 %v548
        %v1311 = vunpack.c.l.b16 %v549
        %v1312 = vunpack.c.h.b16 %v549
        %v1313 = vunpack.c.l.b16 %v550
        %v1314 = vunpack.c.h.b16 %v550
        %v1315 = vunpack.c.l.b16 %v551
        %v1316 = vunpack.c.h.b16 %v551
        %v1317 = vunpack.c.l.b16 %v552
        %v1318 = vunpack.c.h.b16 %v552
        %v1319 = vunpack.c.l.b16 %v553
        %v1320 = vunpack.c.h.b16 %v553
        %v1321 = vunpack.c.l.b16 %v554
        %v1322 = vunpack.c.h.b16 %v554
        %v1323 = vunpack.c.l.b16 %v555
        %v1324 = vunpack.c.h.b16 %v555
        %v1325 = vunpack.c.l.b16 %v556
        %v1326 = vunpack.c.h.b16 %v556
        %v1327 = vunpack.c.l.b16 %v557
        %v1328 = vunpack.c.h.b16 %v557
        %v1329 = vunpack.c.l.b16 %v558
        %v1330 = vunpack.c.h.b16 %v558
        %v1331 = vunpack.c.l.b16 %v559
        %v1332 = vunpack.c.h.b16 %v559
        %v1333 = vunpack.c.l.b16 %v560
        %v1334 = vunpack.c.h.b16 %v560
        %v1335 = vunpack.c.l.b16 %v561
        %v1336 = vunpack.c.h.b16 %v561
        %v1337 = vunpack.c.l.b16 %v562
        %v1338 = vunpack.c.h.b16 %v562
        %v1339 = vunpack.c.l.b16 %v563
        %v1340 = vunpack.c.h.b16 %v563
        %v1341 = vunpack.c.l.b16 %v564
        %v1342 = vunpack.c.h.b16 %v564
        %v1343 = vunpack.c.l.b16 %v565
        %v1344 = vunpack.c.h.b16 %v565
        %v1345 = vunpack.c.l.b16 %v566
        %v1346 = vunpack.c.h.b16 %v566
        %v1347 = vunpack.c.l.b16 %v567
        %v1348 = vunpack.c.h.b16 %v567
        %v1349 = vunpack.c.l.b16 %v568
        %v1350 = vunpack.c.h.b16 %v568
        %v1351 = vunpack.c.l.b16 %v569
        %v1352 = vunpack.c.h.b16 %v569
        %v1353 = vunpack.c.l.b16 %v570
        %v1354 = vunpack.c.h.b16 %v570
        %v1355 = vunpack.c.l.b16 %v571
        %v1356 = vunpack.c.h.b16 %v571
        %v1357 = vunpack.c.l.b16 %v572
        %v1358 = vunpack.c.h.b16 %v572
        %v1359 = vunpack.c.l.b16 %v573
        %v1360 = vunpack.c.h.b16 %v573
        %v1361 = vunpack.c.l.b16 %v574
        %v1362 = vunpack.c.h.b16 %v574
        %v1363 = vunpack.c.l.b16 %v575
        %v1364 = vunpack.c.h.b16 %v575
        %v1365 = vunpack.c.l.b16 %v576
        %v1366 = vunpack.c.h.b16 %v576
        %v1367 = vunpack.c.l.b16 %v577
        %v1368 = vunpack.c.h.b16 %v577
        %v1369 = vunpack.c.l.b16 %v578
        %v1370 = vunpack.c.h.b16 %v578
        %v1371 = vunpack.c.l.b16 %v579
        %v1372 = vunpack.c.h.b16 %v579
        %v1373 = vunpack.c.l.b16 %v580
        %v1374 = vunpack.c.h.b16 %v580
        %v1375 = vunpack.c.l.b16 %v581
        %v1376 = vunpack.c.h.b16 %v581
        %v1377 = vunpack.c.l.b16 %v582
        %v1378 = vunpack.c.h.b16 %v582
        %v1379 = vunpack.c.l.b16 %v583
        %v1380 = vunpack.c.h.b16 %v583
        %v1381 = vunpack.c.l.b16 %v584
        %v1382 = vunpack.c.h.b16 %v584
        %v1383 = vunpack.c.l.b16 %v585
        %v1384 = vunpack.c.h.b16 %v585
        %v1385 = vunpack.c.l.b16 %v586
        %v1386 = vunpack.c.h.b16 %v586
        %v1387 = vunpack.c.l.b16 %v587
        %v1388 = vunpack.c.h.b16 %v587
        %v1389 = vunpack.c.l.b16 %v588
        %v1390 = vunpack.c.h.b16 %v588
        %v1391 = vunpack.c.l.b16 %v589
        %v1392 = vunpack.c.h.b16 %v589
        %v1393 = vunpack.c.l.b16 %v590
        %v1394 = vunpack.c.h.b16 %v590
        %v1395 = vunpack.c.l.b16 %v591
        %v1396 = vunpack.c.h.b16 %v591
        %v1397 = vunpack.c.l.b16 %v592
        %v1398 = vunpack.c.h.b16 %v592
        %v1399 = vunpack.c.l.b16 %v593
        %v1400 = vunpack.c.h.b16 %v593
        %v1401 = vunpack.c.l.b16 %v594
        %v1402 = vunpack.c.h.b16 %v594
        %v1403 = vunpack.c.l.b16 %v595
        %v1404 = vunpack.c.h.b16 %v595
        %v1405 = vunpack.c.l.b16 %v596
        %v1406 = vunpack.c.h.b16 %v596
        %v1407 = vunpack.c.l.b16 %v597
        %v1408 = vunpack.c.h.b16 %v597
        %v1409 = vunpack.c.l.b16 %v598
        %v1410 = vunpack.c.h.b16 %v598
        %v1411 = vunpack.c.l.b16 %v599
        %v1412 = vunpack.c.h.b16 %v599
        %v1413 = vunpack.c.l.b16 %v600
        %v1414 = vunpack.c.h.b16 %v600
        %v1415 = vunpack.c.l.b16 %v601
        %v1416 = vunpack.c.h.b16 %v601
        %v1417 = vunpack.c.l.b16 %v602
        %v1418 = vunpack.c.h.b16 %v602
        %v1419 = vunpack.c.l.b16 %v603
        %v1420 = vunpack.c.h.b16 %v603
        %v1421 = vunpack.c.l.b16 %v604
        %v1422 = vunpack.c.h.b16 %v604
        %v1423 = vunpack.c.l.b16 %v605
        %v1424 = vunpack.c.h.b16 %v605
        %v1425 = vunpack.c.l.b16 %v606
        %v1426 = vunpack.c.h.b16 %v606
        %v1427 = vunpack.c.l.b16 %v607
        %v1428 = vunpack.c.h.b16 %v607
        %v1429 = vunpack.c.l.b16 %v608
        %v1430 = vunpack.c.h.b16 %v608
        %v1431 = vunpack.c.l.b16 %v609
        %v1432 = vunpack.c.h.b16 %v609
        %v1433 = vunpack.c.l.b16 %v610
        %v1434 = vunpack.c.h.b16 %v610
        %v1435 = vunpack.c.l.b16 %v611
        %v1436 = vunpack.c.h.b16 %v611
        %v1437 = vunpack.c.l.b16 %v612
        %v1438 = vunpack.c.h.b16 %v612
        %v1439 = vunpack.c.l.b16 %v613
        %v1440 = vunpack.c.h.b16 %v613
        %v1441 = vunpack.c.l.b16 %v614
        %v1442 = vunpack.c.h.b16 %v614
        %v1443 = vunpack.c.l.b16 %v615
        %v1444 = vunpack.c.h.b16 %v615
        %v1445 = vunpack.c.l.b16 %v616
        %v1446 = vunpack.c.h.b16 %v616
        %v1447 = vunpack.c.l.b16 %v617
        %v1448 = vunpack.c.h.b16 %v617
        %v1449 = vunpack.c.l.b16 %v618
        %v1450 = vunpack.c.h.b16 %v618
        %v1451 = vunpack.c.l.b16 %v619
        %v1452 = vunpack.c.h.b16 %v619
        %v1453 = vunpack.c.l.b16 %v620
        %v1454 = vunpack.c.h.b16 %v620
        %v1455 = vunpack.c.l.b16 %v621
        %v1456 = vunpack.c.h.b16 %v621
        %v1457 = vunpack.c.l.b16 %v622
        %v1458 = vunpack.c.h.b16 %v622
        %v1459 = vunpack.c.l.b16 %v623
        %v1460 = vunpack.c.h.b16 %v623
        %v1461 = vunpack.c.l.b16 %v624
        %v1462 = vunpack.c.h.b16 %v624
        %v1463 = vunpack.c.l.b16 %v625
        %v1464 = vunpack.c.h.b16 %v625
        %v1465 = vunpack.c.l.b16 %v626
        %v1466 = vunpack.c.h.b16 %v626
        %v1467 = vunpack.c.l.b16 %v627
        %v1468 = vunpack.c.h.b16 %v627
        %v1469 = vunpack.c.l.b16 %v628
        %v1470 = vunpack.c.h.b16 %v628
        %v1471 = vunpack.c.l.b16 %v629
        %v1472 = vunpack.c.h.b16 %v629
        %v1473 = vunpack.c.l.b16 %v630
        %v1474 = vunpack.c.h.b16 %v630
        %v1475 = vunpack.c.l.b16 %v631
        %v1476 = vunpack.c.h.b16 %v631
        %v1477 = vunpack.c.l.b16 %v632
        %v1478 = vunpack.c.h.b16 %v632
        %v1479 = vunpack.c.l.b16 %v633
        %v1480 = vunpack.c.h.b16 %v633
        %v1481 = vunpack.c.l.b16 %v634
        %v1482 = vunpack.c.h.b16 %v634
        %v1483 = vpack.c.b16 %v973, %v971
        %v1484 = vpack.c.b16 %v974, %v972
        %v1485 = vpack.c.b16 %v977, %v975
        %v1486 = vpack.c.b16 %v978, %v976
        %v1487 = vpack.c.b16 %v981, %v979
        %v1488 = vpack.c.b16 %v982, %v980
        %v1489 = vpack.c.b16 %v985, %v983
        %v1490 = vpack.c.b16 %v986, %v984
        %v1491 = vpack.c.b16 %v989, %v987
        %v1492 = vpack.c.b16 %v990, %v988
        %v1493 = vpack.c.b16 %v993, %v991
        %v1494 = vpack.c.b16 %v994, %v992
        %v1495 = vpack.c.b16 %v997, %v995
        %v1496 = vpack.c.b16 %v998, %v996
        %v1497 = vpack.c.b16 %v1001, %v999
        %v1498 = vpack.c.b16 %v1002, %v1000
        %v1499 = vpack.c.b16 %v1005, %v1003
        %v1500 = vpack.c.b16 %v1006, %v1004
        %v1501 = vpack.c.b16 %v1009, %v1007
        %v1502 = vpack.c.b16 %v1010, %v1008
        %v1503 = vpack.c.b16 %v1013, %v1011
        %v1504 = vpack.c.b16 %v1014, %v1012
        %v1505 = vpack.c.b16 %v1017, %v1015
        %v1506 = vpack.c.b16 %v1018, %v1016
        %v1507 = vpack.c.b16 %v1021, %v1019
        %v1508 = vpack.c.b16 %v1022, %v1020
        %v1509 = vpack.c.b16 %v1025, %v1023
        %v1510 = vpack.c.b16 %v1026, %v1024
        %v1511 = vpack.c.b16 %v1029, %v1027
        %v1512 = vpack.c.b16 %v1030, %v1028
        %v1513 = vpack.c.b16 %v1033, %v1031
        %v1514 = vpack.c.b16 %v1034, %v1032
        %v1515 = vpack.c.b16 %v1037, %v1035
        %v1516 = vpack.c.b16 %v1038, %v1036
        %v1517 = vpack.c.b16 %v1041, %v1039
        %v1518 = vpack.c.b16 %v1042, %v1040
        %v1519 = vpack.c.b16 %v1045, %v1043
        %v1520 = vpack.c.b16 %v1046, %v1044
        %v1521 = vpack.c.b16 %v1049, %v1047
        %v1522 = vpack.c.b16 %v1050, %v1048
        %v1523 = vpack.c.b16 %v1053, %v1051
        %v1524 = vpack.c.b16 %v1054, %v1052
        %v1525 = vpack.c.b16 %v1057, %v1055
        %v1526 = vpack.c.b16 %v1058, %v1056
        %v1527 = vpack.c.b16 %v1061, %v1059
        %v1528 = vpack.c.b16 %v1062, %v1060
        %v1529 = vpack.c.b16 %v1065, %v1063
        %v1530 = vpack.c.b16 %v1066, %v1064
        %v1531 = vpack.c.b16 %v1069, %v1067
        %v1532 = vpack.c.b16 %v1070, %v1068
        %v1533 = vpack.c.b16 %v1073, %v1071
        %v1534 = vpack.c.b16 %v1074, %v1072
        %v1535 = vpack.c.b16 %v1077, %v1075
        %v1536 = vpack.c.b16 %v1078, %v1076
        %v1537 = vpack.c.b16 %v1081, %v1079
        %v1538 = vpack.c.b16 %v1082, %v1080
        %v1539 = vpack.c.b16 %v1085, %v1083
        %v1540 = vpack.c.b16 %v1086, %v1084
        %v1541 = vpack.c.b16 %v1089, %v1087
        %v1542 = vpack.c.b16 %v1090, %v1088
        %v1543 = vpack.c.b16 %v1093, %v1091
        %v1544 = vpack.c.b16 %v1094, %v1092
        %v1545 = vpack.c.b16 %v1097, %v1095
        %v1546 = vpack.c.b16 %v1098, %v1096
        %v1547 = vpack.c.b16 %v1101, %v1099
        %v1548 = vpack.c.b16 %v1102, %v1100
        %v1549 = vpack.c.b16 %v1105, %v1103
        %v1550 = vpack.c.b16 %v1106, %v1104
        %v1551 = vpack.c.b16 %v1109, %v1107
        %v1552 = vpack.c.b16 %v1110, %v1108
        %v1553 = vpack.c.b16 %v1113, %v1111
        %v1554 = vpack.c.b16 %v1114, %v1112
        %v1555 = vpack.c.b16 %v1117, %v1115
        %v1556 = vpack.c.b16 %v1118, %v1116
        %v1557 = vpack.c.b16 %v1121, %v1119
        %v1558 = vpack.c.b16 %v1122, %v1120
        %v1559 = vpack.c.b16 %v1125, %v1123
        %v1560 = vpack.c.b16 %v1126, %v1124
        %v1561 = vpack.c.b16 %v1129, %v1127
        %v1562 = vpack.c.b16 %v1130, %v1128
        %v1563 = vpack.c.b16 %v1133, %v1131
        %v1564 = vpack.c.b16 %v1134, %v1132
        %v1565 = vpack.c.b16 %v1137, %v1135
        %v1566 = vpack.c.b16 %v1138, %v1136
        %v1567 = vpack.c.b16 %v1141, %v1139
        %v1568 = vpack.c.b16 %v1142, %v1140
        %v1569 = vpack.c.b16 %v1145, %v1143
        %v1570 = vpack.c.b16 %v1146, %v1144
        %v1571 = vpack.c.b16 %v1149, %v1147
        %v1572 = vpack.c.b16 %v1150, %v1148
        %v1573 = vpack.c.b16 %v1153, %v1151
        %v1574 = vpack.c.b16 %v1154, %v1152
        %v1575 = vpack.c.b16 %v1157, %v1155
        %v1576 = vpack.c.b16 %v1158, %v1156
        %v1577 = vpack.c.b16 %v1161, %v1159
        %v1578 = vpack.c.b16 %v1162, %v1160
        %v1579 = vpack.c.b16 %v1165, %v1163
        %v1580 = vpack.c.b16 %v1166, %v1164
        %v1581 = vpack.c.b16 %v1169, %v1167
        %v1582 = vpack.c.b16 %v1170, %v1168
        %v1583 = vpack.c.b16 %v1173, %v1171
        %v1584 = vpack.c.b16 %v1174, %v1172
        %v1585 = vpack.c.b16 %v1177, %v1175
        %v1586 = vpack.c.b16 %v1178, %v1176
        %v1587 = vpack.c.b16 %v1181, %v1179
        %v1588 = vpack.c.b16 %v1182, %v1180
        %v1589 = vpack.c.b16 %v1185, %v1183
        %v1590 = vpack.c.b16 %v1186, %v1184
        %v1591 = vpack.c.b16 %v1189, %v1187
        %v1592 = vpack.c.b16 %v1190, %v1188
        %v1593 = vpack.c.b16 %v1193, %v1191
        %v1594 = vpack.c.b16 %v1194, %v1192
        %v1595 = vpack.c.b16 %v1197, %v1195
        %v1596 = vpack.c.b16 %v1198, %v1196
        %v1597 = vpack.c.b16 %v1201, %v1199
        %v1598 = vpack.c.b16 %v1202, %v1200
        %v1599 = vpack.c.b16 %v1205, %v1203
        %v1600 = vpack.c.b16 %v1206, %v1204
        %v1601 = vpack.c.b16 %v1209, %v1207
        %v1602 = vpack.c.b16 %v1210, %v1208
        %v1603 = vpack.c.b16 %v1213, %v1211
        %v1604 = vpack.c.b16 %v1214, %v1212
        %v1605 = vpack.c.b16 %v1217, %v1215
        %v1606 = vpack.c.b16 %v1218, %v1216
        %v1607 = vpack.c.b16 %v1221, %v1219
        %v1608 = vpack.c.b16 %v1222, %v1220
        %v1609 = vpack.c.b16 %v1225, %v1223
        %v1610 = vpack.c.b16 %v1226, %v1224
        %v1611 = vpack.c.b16 %v1229, %v1227
        %v1612 = vpack.c.b16 %v1230, %v1228
        %v1613 = vpack.c.b16 %v1233, %v1231
        %v1614 = vpack.c.b16 %v1234, %v1232
        %v1615 = vpack.c.b16 %v1237, %v1235
        %v1616 = vpack.c.b16 %v1238, %v1236
        %v1617 = vpack.c.b16 %v1241, %v1239
        %v1618 = vpack.c.b16 %v1242, %v1240
        %v1619 = vpack.c.b16 %v1245, %v1243
        %v1620 = vpack.c.b16 %v1246, %v1244
        %v1621 = vpack.c.b16 %v1249, %v1247
        %v1622 = vpack.c.b16 %v1250, %v1248
        %v1623 = vpack.c.b16 %v1253, %v1251
        %v1624 = vpack.c.b16 %v1254, %v1252
        %v1625 = vpack.c.b16 %v1257, %v1255
        %v1626 = vpack.c.b16 %v1258, %v1256
        %v1627 = vpack.c.b16 %v1261, %v1259
        %v1628 = vpack.c.b16 %v1262, %v1260
        %v1629 = vpack.c.b16 %v1265, %v1263
        %v1630 = vpack.c.b16 %v1266, %v1264
        %v1631 = vpack.c.b16 %v1269, %v1267
        %v1632 = vpack.c.b16 %v1270, %v1268
        %v1633 = vpack.c.b16 %v1273, %v1271
        %v1634 = vpack.c.b16 %v1274, %v1272
        %v1635 = vpack.c.b16 %v1277, %v1275
        %v1636 = vpack.c.b16 %v1278, %v1276
        %v1637 = vpack.c.b16 %v1281, %v1279
        %v1638 = vpack.c.b16 %v1282, %v1280
        %v1639 = vpack.c.b16 %v1285, %v1283
        %v1640 = vpack.c.b16 %v1286, %v1284
        %v1641 = vpack.c.b16 %v1289, %v1287
        %v1642 = vpack.c.b16 %v1290, %v1288
        %v1643 = vpack.c.b16 %v1293, %v1291
        %v1644 = vpack.c.b16 %v1294, %v1292
        %v1645 = vpack.c.b16 %v1297, %v1295
        %v1646 = vpack.c.b16 %v1298, %v1296
        %v1647 = vpack.c.b16 %v1301, %v1299
        %v1648 = vpack.c.b16 %v1302, %v1300
        %v1649 = vpack.c.b16 %v1305, %v1303
        %v1650 = vpack.c.b16 %v1306, %v1304
        %v1651 = vpack.c.b16 %v1309, %v1307
        %v1652 = vpack.c.b16 %v1310, %v1308
        %v1653 = vpack.c.b16 %v1313, %v1311
        %v1654 = vpack.c.b16 %v1314, %v1312
        %v1655 = vpack.c.b16 %v1317, %v1315
        %v1656 = vpack.c.b16 %v1318, %v1316
        %v1657 = vpack.c.b16 %v1321, %v1319
        %v1658 = vpack.c.b16 %v1322, %v1320
        %v1659 = vpack.c.b16 %v1325, %v1323
        %v1660 = vpack.c.b16 %v1326, %v1324
        %v1661 = vpack.c.b16 %v1329, %v1327
        %v1662 = vpack.c.b16 %v1330, %v1328
        %v1663 = vpack.c.b16 %v1333, %v1331
        %v1664 = vpack.c.b16 %v1334, %v1332
        %v1665 = vpack.c.b16 %v1337, %v1335
        %v1666 = vpack.c.b16 %v1338, %v1336
        %v1667 = vpack.c.b16 %v1341, %v1339
        %v1668 = vpack.c.b16 %v1342, %v1340
        %v1669 = vpack.c.b16 %v1345, %v1343
        %v1670 = vpack.c.b16 %v1346, %v1344
        %v1671 = vpack.c.b16 %v1349, %v1347
        %v1672 = vpack.c.b16 %v1350, %v1348
        %v1673 = vpack.c.b16 %v1353, %v1351
        %v1674 = vpack.c.b16 %v1354, %v1352
        %v1675 = vpack.c.b16 %v1357, %v1355
        %v1676 = vpack.c.b16 %v1358, %v1356
        %v1677 = vpack.c.b16 %v1361, %v1359
        %v1678 = vpack.c.b16 %v1362, %v1360
        %v1679 = vpack.c.b16 %v1365, %v1363
        %v1680 = vpack.c.b16 %v1366, %v1364
        %v1681 = vpack.c.b16 %v1369, %v1367
        %v1682 = vpack.c.b16 %v1370, %v1368
        %v1683 = vpack.c.b16 %v1373, %v1371
        %v1684 = vpack.c.b16 %v1374, %v1372
        %v1685 = vpack.c.b16 %v1377, %v1375
        %v1686 = vpack.c.b16 %v1378, %v1376
        %v1687 = vpack.c.b16 %v1381, %v1379
        %v1688 = vpack.c.b16 %v1382, %v1380
        %v1689 = vpack.c.b16 %v1385, %v1383
        %v1690 = vpack.c.b16 %v1386, %v1384
        %v1691 = vpack.c.b16 %v1389, %v1387
        %v1692 = vpack.c.b16 %v1390, %v1388
        %v1693 = vpack.c.b16 %v1393, %v1391
        %v1694 = vpack.c.b16 %v1394, %v1392
        %v1695 = vpack.c.b16 %v1397, %v1395
        %v1696 = vpack.c.b16 %v1398, %v1396
        %v1697 = vpack.c.b16 %v1401, %v1399
        %v1698 = vpack.c.b16 %v1402, %v1400
        %v1699 = vpack.c.b16 %v1405, %v1403
        %v1700 = vpack.c.b16 %v1406, %v1404
        %v1701 = vpack.c.b16 %v1409, %v1407
        %v1702 = vpack.c.b16 %v1410, %v1408
        %v1703 = vpack.c.b16 %v1413, %v1411
        %v1704 = vpack.c.b16 %v1414, %v1412
        %v1705 = vpack.c.b16 %v1417, %v1415
        %v1706 = vpack.c.b16 %v1418, %v1416
        %v1707 = vpack.c.b16 %v1421, %v1419
        %v1708 = vpack.c.b16 %v1422, %v1420
        %v1709 = vpack.c.b16 %v1425, %v1423
        %v1710 = vpack.c.b16 %v1426, %v1424
        %v1711 = vpack.c.b16 %v1429, %v1427
        %v1712 = vpack.c.b16 %v1430, %v1428
        %v1713 = vpack.c.b16 %v1433, %v1431
        %v1714 = vpack.c.b16 %v1434, %v1432
        %v1715 = vpack.c.b16 %v1437, %v1435
        %v1716 = vpack.c.b16 %v1438, %v1436
        %v1717 = vpack.c.b16 %v1441, %v1439
        %v1718 = vpack.c.b16 %v1442, %v1440
        %v1719 = vpack.c.b16 %v1445, %v1443
        %v1720 = vpack.c.b16 %v1446, %v1444
        %v1721 = vpack.c.b16 %v1449, %v1447
        %v1722 = vpack.c.b16 %v1450, %v1448
        %v1723 = vpack.c.b16 %v1453, %v1451
        %v1724 = vpack.c.b16 %v1454, %v1452
        %v1725 = vpack.c.b16 %v1457, %v1455
        %v1726 = vpack.c.b16 %v1458, %v1456
        %v1727 = vpack.c.b16 %v1461, %v1459
        %v1728 = vpack.c.b16 %v1462, %v1460
        %v1729 = vpack.c.b16 %v1465, %v1463
        %v1730 = vpack.c.b16 %v1466, %v1464
        %v1731 = vpack.c.b16 %v1469, %v1467
        %v1732 = vpack.c.b16 %v1470, %v1468
        %v1733 = vpack.c.b16 %v1473, %v1471
        %v1734 = vpack.c.b16 %v1474, %v1472
        %v1735 = vpack.c.b16 %v1477, %v1475
        %v1736 = vpack.c.b16 %v1478, %v1476
        %v1737 = vpack.c.b16 %v1481, %v1479
        %v1738 = vpack.c.b16 %v1482, %v1480
        %1995 = vmatprep.subr.bf16.mxu0 %v1484
        %1996 = vmatpush1.bf16.msra.mxu0 %v1483
        %1997 = vmatprep.subr.bf16.mxu0 %v1486
        %1998 = vmatpush1.bf16.msra.mxu0 %v1485
        %1999 = vmatprep.subr.bf16.mxu0 %v1488
        %2000 = vmatpush1.bf16.msra.mxu0 %v1487
        %2001 = vmatprep.subr.bf16.mxu0 %v1490
        %2002 = vmatpush1.bf16.msra.mxu0 %v1489
        %2003 = vmatprep.subr.bf16.mxu0 %v1492
        %2004 = vmatpush1.bf16.msra.mxu0 %v1491
        %2005 = vmatprep.subr.bf16.mxu0 %v1494
        %2006 = vmatpush1.bf16.msra.mxu0 %v1493
        %2007 = vmatprep.subr.bf16.mxu0 %v1496
        %2008 = vmatpush1.bf16.msra.mxu0 %v1495
        %2009 = vmatprep.subr.bf16.mxu0 %v1498
        %2010 = vmatpush1.bf16.msra.mxu0 %v1497
        %2011 = vmatprep.subr.bf16.mxu0 %v1500
        %2012 = vmatpush1.bf16.msra.mxu0 %v1499
        %2013 = vmatprep.subr.bf16.mxu0 %v1502
        %2014 = vmatpush1.bf16.msra.mxu0 %v1501
        %2015 = vmatprep.subr.bf16.mxu0 %v1504
        %2016 = vmatpush1.bf16.msra.mxu0 %v1503
        %2017 = vmatprep.subr.bf16.mxu0 %v1506
        %2018 = vmatpush1.bf16.msra.mxu0 %v1505
        %2019 = vmatprep.subr.bf16.mxu0 %v1508
        %2020 = vmatpush1.bf16.msra.mxu0 %v1507
        %2021 = vmatprep.subr.bf16.mxu0 %v1510
        %2022 = vmatpush1.bf16.msra.mxu0 %v1509
        %2023 = vmatprep.subr.bf16.mxu0 %v1512
        %2024 = vmatpush1.bf16.msra.mxu0 %v1511
        %2025 = vmatprep.subr.bf16.mxu0 %v1514
        %2026 = vmatpush1.bf16.msra.mxu0 %v1513
        %2027 = vmatprep.mubr.bf16.mxu0 %v684
        %2028 = vmatmul.mubr.bf16.gmra.mrb[0].mxu0 %v683
        %v2029 = vpop.f32.mrb[0].mxu0
        %v2030 = vadd.f32 0.0, %v2029
        %v2031 = vpop.f32.mrb[0].mxu0
        %v2032 = vadd.f32 0.0, %v2031
        %v2033 = vpop.f32.mrb[0].mxu0
        %v2034 = vadd.f32 0.0, %v2033
        %v2035 = vpop.f32.mrb[0].mxu0
        %v2036 = vadd.f32 0.0, %v2035
        %2037 = vdwg.mxu0
        %2038 = vmatprep.subr.bf16.mxu0 %v1516
        %2039 = vmatpush1.bf16.msra.mxu0 %v1515
        %2040 = vmatprep.subr.bf16.mxu0 %v1518
        %2041 = vmatpush1.bf16.msra.mxu0 %v1517
        %2042 = vmatprep.subr.bf16.mxu0 %v1520
        %2043 = vmatpush1.bf16.msra.mxu0 %v1519
        %2044 = vmatprep.subr.bf16.mxu0 %v1522
        %2045 = vmatpush1.bf16.msra.mxu0 %v1521
        %2046 = vmatprep.subr.bf16.mxu0 %v1524
        %2047 = vmatpush1.bf16.msra.mxu0 %v1523
        %2048 = vmatprep.subr.bf16.mxu0 %v1526
        %2049 = vmatpush1.bf16.msra.mxu0 %v1525
        %2050 = vmatprep.subr.bf16.mxu0 %v1528
        %2051 = vmatpush1.bf16.msra.mxu0 %v1527
        %2052 = vmatprep.subr.bf16.mxu0 %v1530
        %2053 = vmatpush1.bf16.msra.mxu0 %v1529
        %2054 = vmatprep.subr.bf16.mxu0 %v1532
        %2055 = vmatpush1.bf16.msra.mxu0 %v1531
        %2056 = vmatprep.subr.bf16.mxu0 %v1534
        %2057 = vmatpush1.bf16.msra.mxu0 %v1533
        %2058 = vmatprep.subr.bf16.mxu0 %v1536
        %2059 = vmatpush1.bf16.msra.mxu0 %v1535
        %2060 = vmatprep.subr.bf16.mxu0 %v1538
        %2061 = vmatpush1.bf16.msra.mxu0 %v1537
        %2062 = vmatprep.subr.bf16.mxu0 %v1540
        %2063 = vmatpush1.bf16.msra.mxu0 %v1539
        %2064 = vmatprep.subr.bf16.mxu0 %v1542
        %2065 = vmatpush1.bf16.msra.mxu0 %v1541
        %2066 = vmatprep.subr.bf16.mxu0 %v1544
        %2067 = vmatpush1.bf16.msra.mxu0 %v1543
        %2068 = vmatprep.subr.bf16.mxu0 %v1546
        %2069 = vmatpush1.bf16.msra.mxu0 %v1545
        %2070 = vmatprep.mubr.bf16.mxu0 %v686
        %2071 = vmatmul.mubr.bf16.gmra.mrb[0].mxu0 %v685
        %v2072 = vpop.f32.mrb[0].mxu0
        %v2073 = vadd.f32 %v2030, %v2072
        %v2074 = vpop.f32.mrb[0].mxu0
        %v2075 = vadd.f32 %v2032, %v2074
        %v2076 = vpop.f32.mrb[0].mxu0
        %v2077 = vadd.f32 %v2034, %v2076
        %v2078 = vpop.f32.mrb[0].mxu0
        %v2079 = vadd.f32 %v2036, %v2078
        %2080 = vdwg.mxu0
        %2081 = vmatprep.subr.bf16.mxu0 %v1548
        %2082 = vmatpush1.bf16.msra.mxu0 %v1547
        %2083 = vmatprep.subr.bf16.mxu0 %v1550
        %2084 = vmatpush1.bf16.msra.mxu0 %v1549
        %2085 = vmatprep.subr.bf16.mxu0 %v1552
        %2086 = vmatpush1.bf16.msra.mxu0 %v1551
        %2087 = vmatprep.subr.bf16.mxu0 %v1554
        %2088 = vmatpush1.bf16.msra.mxu0 %v1553
        %2089 = vmatprep.subr.bf16.mxu0 %v1556
        %2090 = vmatpush1.bf16.msra.mxu0 %v1555
        %2091 = vmatprep.subr.bf16.mxu0 %v1558
        %2092 = vmatpush1.bf16.msra.mxu0 %v1557
        %2093 = vmatprep.subr.bf16.mxu0 %v1560
        %2094 = vmatpush1.bf16.msra.mxu0 %v1559
        %2095 = vmatprep.subr.bf16.mxu0 %v1562
        %2096 = vmatpush1.bf16.msra.mxu0 %v1561
        %2097 = vmatprep.subr.bf16.mxu0 %v1564
        %2098 = vmatpush1.bf16.msra.mxu0 %v1563
        %2099 = vmatprep.subr.bf16.mxu0 %v1566
        %2100 = vmatpush1.bf16.msra.mxu0 %v1565
        %2101 = vmatprep.subr.bf16.mxu0 %v1568
        %2102 = vmatpush1.bf16.msra.mxu0 %v1567
        %2103 = vmatprep.subr.bf16.mxu0 %v1570
        %2104 = vmatpush1.bf16.msra.mxu0 %v1569
        %2105 = vmatprep.subr.bf16.mxu0 %v1572
        %2106 = vmatpush1.bf16.msra.mxu0 %v1571
        %2107 = vmatprep.subr.bf16.mxu0 %v1574
        %2108 = vmatpush1.bf16.msra.mxu0 %v1573
        %2109 = vmatprep.subr.bf16.mxu0 %v1576
        %2110 = vmatpush1.bf16.msra.mxu0 %v1575
        %2111 = vmatprep.subr.bf16.mxu0 %v1578
        %2112 = vmatpush1.bf16.msra.mxu0 %v1577
        %2113 = vmatprep.mubr.bf16.mxu0 %v688
        %2114 = vmatmul.mubr.bf16.gmra.mrb[0].mxu0 %v687
        %v2115 = vpop.f32.mrb[0].mxu0
        %v2116 = vadd.f32 %v2073, %v2115
        %v2117 = vpop.f32.mrb[0].mxu0
        %v2118 = vadd.f32 %v2075, %v2117
        %v2119 = vpop.f32.mrb[0].mxu0
        %v2120 = vadd.f32 %v2077, %v2119
        %v2121 = vpop.f32.mrb[0].mxu0
        %v2122 = vadd.f32 %v2079, %v2121
        %2123 = vdwg.mxu0
        %2124 = vmatprep.subr.bf16.mxu0 %v1580
        %2125 = vmatpush1.bf16.msra.mxu0 %v1579
        %2126 = vmatprep.subr.bf16.mxu0 %v1582
        %2127 = vmatpush1.bf16.msra.mxu0 %v1581
        %2128 = vmatprep.subr.bf16.mxu0 %v1584
        %2129 = vmatpush1.bf16.msra.mxu0 %v1583
        %2130 = vmatprep.subr.bf16.mxu0 %v1586
        %2131 = vmatpush1.bf16.msra.mxu0 %v1585
        %2132 = vmatprep.subr.bf16.mxu0 %v1588
        %2133 = vmatpush1.bf16.msra.mxu0 %v1587
        %2134 = vmatprep.subr.bf16.mxu0 %v1590
        %2135 = vmatpush1.bf16.msra.mxu0 %v1589
        %2136 = vmatprep.subr.bf16.mxu0 %v1592
        %2137 = vmatpush1.bf16.msra.mxu0 %v1591
        %2138 = vmatprep.subr.bf16.mxu0 %v1594
        %2139 = vmatpush1.bf16.msra.mxu0 %v1593
        %2140 = vmatprep.subr.bf16.mxu0 %v1596
        %2141 = vmatpush1.bf16.msra.mxu0 %v1595
        %2142 = vmatprep.subr.bf16.mxu0 %v1598
        %2143 = vmatpush1.bf16.msra.mxu0 %v1597
        %2144 = vmatprep.subr.bf16.mxu0 %v1600
        %2145 = vmatpush1.bf16.msra.mxu0 %v1599
        %2146 = vmatprep.subr.bf16.mxu0 %v1602
        %2147 = vmatpush1.bf16.msra.mxu0 %v1601
        %2148 = vmatprep.subr.bf16.mxu0 %v1604
        %2149 = vmatpush1.bf16.msra.mxu0 %v1603
        %2150 = vmatprep.subr.bf16.mxu0 %v1606
        %2151 = vmatpush1.bf16.msra.mxu0 %v1605
        %2152 = vmatprep.subr.bf16.mxu0 %v1608
        %2153 = vmatpush1.bf16.msra.mxu0 %v1607
        %2154 = vmatprep.subr.bf16.mxu0 %v1610
        %2155 = vmatpush1.bf16.msra.mxu0 %v1609
        %2156 = vmatprep.mubr.bf16.mxu0 %v690
        %2157 = vmatmul.mubr.bf16.gmra.mrb[0].mxu0 %v689
        %v2158 = vpop.f32.mrb[0].mxu0
        %v2159 = vadd.f32 %v2116, %v2158
        %v2160 = vpop.f32.mrb[0].mxu0
        %v2161 = vadd.f32 %v2118, %v2160
        %v2162 = vpop.f32.mrb[0].mxu0
        %v2163 = vadd.f32 %v2120, %v2162
        %v2164 = vpop.f32.mrb[0].mxu0
        %v2165 = vadd.f32 %v2122, %v2164
        %2166 = vdwg.mxu0
        %2167 = vmatprep.subr.bf16.mxu0 %v1612
        %2168 = vmatpush1.bf16.msra.mxu0 %v1611
        %2169 = vmatprep.subr.bf16.mxu0 %v1614
        %2170 = vmatpush1.bf16.msra.mxu0 %v1613
        %2171 = vmatprep.subr.bf16.mxu0 %v1616
        %2172 = vmatpush1.bf16.msra.mxu0 %v1615
        %2173 = vmatprep.subr.bf16.mxu0 %v1618
        %2174 = vmatpush1.bf16.msra.mxu0 %v1617
        %2175 = vmatprep.subr.bf16.mxu0 %v1620
        %2176 = vmatpush1.bf16.msra.mxu0 %v1619
        %2177 = vmatprep.subr.bf16.mxu0 %v1622
        %2178 = vmatpush1.bf16.msra.mxu0 %v1621
        %2179 = vmatprep.subr.bf16.mxu0 %v1624
        %2180 = vmatpush1.bf16.msra.mxu0 %v1623
        %2181 = vmatprep.subr.bf16.mxu0 %v1626
        %2182 = vmatpush1.bf16.msra.mxu0 %v1625
        %2183 = vmatprep.subr.bf16.mxu0 %v1628
        %2184 = vmatpush1.bf16.msra.mxu0 %v1627
        %2185 = vmatprep.subr.bf16.mxu0 %v1630
        %2186 = vmatpush1.bf16.msra.mxu0 %v1629
        %2187 = vmatprep.subr.bf16.mxu0 %v1632
        %2188 = vmatpush1.bf16.msra.mxu0 %v1631
        %2189 = vmatprep.subr.bf16.mxu0 %v1634
        %2190 = vmatpush1.bf16.msra.mxu0 %v1633
        %2191 = vmatprep.subr.bf16.mxu0 %v1636
        %2192 = vmatpush1.bf16.msra.mxu0 %v1635
        %2193 = vmatprep.subr.bf16.mxu0 %v1638
        %2194 = vmatpush1.bf16.msra.mxu0 %v1637
        %2195 = vmatprep.subr.bf16.mxu0 %v1640
        %2196 = vmatpush1.bf16.msra.mxu0 %v1639
        %2197 = vmatprep.subr.bf16.mxu0 %v1642
        %2198 = vmatpush1.bf16.msra.mxu0 %v1641
        %2199 = vmatprep.mubr.bf16.mxu0 %v692
        %2200 = vmatmul.mubr.bf16.gmra.mrb[0].mxu0 %v691
        %v2201 = vpop.f32.mrb[0].mxu0
        %v2202 = vadd.f32 %v2159, %v2201
        %v2203 = vpop.f32.mrb[0].mxu0
        %v2204 = vadd.f32 %v2161, %v2203
        %v2205 = vpop.f32.mrb[0].mxu0
        %v2206 = vadd.f32 %v2163, %v2205
        %v2207 = vpop.f32.mrb[0].mxu0
        %v2208 = vadd.f32 %v2165, %v2207
        %2209 = vdwg.mxu0
        %2210 = vmatprep.subr.bf16.mxu0 %v1644
        %2211 = vmatpush1.bf16.msra.mxu0 %v1643
        %2212 = vmatprep.subr.bf16.mxu0 %v1646
        %2213 = vmatpush1.bf16.msra.mxu0 %v1645
        %2214 = vmatprep.subr.bf16.mxu0 %v1648
        %2215 = vmatpush1.bf16.msra.mxu0 %v1647
        %2216 = vmatprep.subr.bf16.mxu0 %v1650
        %2217 = vmatpush1.bf16.msra.mxu0 %v1649
        %2218 = vmatprep.subr.bf16.mxu0 %v1652
        %2219 = vmatpush1.bf16.msra.mxu0 %v1651
        %2220 = vmatprep.subr.bf16.mxu0 %v1654
        %2221 = vmatpush1.bf16.msra.mxu0 %v1653
        %2222 = vmatprep.subr.bf16.mxu0 %v1656
        %2223 = vmatpush1.bf16.msra.mxu0 %v1655
        %2224 = vmatprep.subr.bf16.mxu0 %v1658
        %2225 = vmatpush1.bf16.msra.mxu0 %v1657
        %2226 = vmatprep.subr.bf16.mxu0 %v1660
        %2227 = vmatpush1.bf16.msra.mxu0 %v1659
        %2228 = vmatprep.subr.bf16.mxu0 %v1662
        %2229 = vmatpush1.bf16.msra.mxu0 %v1661
        %2230 = vmatprep.subr.bf16.mxu0 %v1664
        %2231 = vmatpush1.bf16.msra.mxu0 %v1663
        %2232 = vmatprep.subr.bf16.mxu0 %v1666
        %2233 = vmatpush1.bf16.msra.mxu0 %v1665
        %2234 = vmatprep.subr.bf16.mxu0 %v1668
        %2235 = vmatpush1.bf16.msra.mxu0 %v1667
        %2236 = vmatprep.subr.bf16.mxu0 %v1670
        %2237 = vmatpush1.bf16.msra.mxu0 %v1669
        %2238 = vmatprep.subr.bf16.mxu0 %v1672
        %2239 = vmatpush1.bf16.msra.mxu0 %v1671
        %2240 = vmatprep.subr.bf16.mxu0 %v1674
        %2241 = vmatpush1.bf16.msra.mxu0 %v1673
        %2242 = vmatprep.mubr.bf16.mxu0 %v694
        %2243 = vmatmul.mubr.bf16.gmra.mrb[0].mxu0 %v693
        %v2244 = vpop.f32.mrb[0].mxu0
        %v2245 = vadd.f32 %v2202, %v2244
        %v2246 = vpop.f32.mrb[0].mxu0
        %v2247 = vadd.f32 %v2204, %v2246
        %v2248 = vpop.f32.mrb[0].mxu0
        %v2249 = vadd.f32 %v2206, %v2248
        %v2250 = vpop.f32.mrb[0].mxu0
        %v2251 = vadd.f32 %v2208, %v2250
        %2252 = vdwg.mxu0
        %2253 = vmatprep.subr.bf16.mxu0 %v1676
        %2254 = vmatpush1.bf16.msra.mxu0 %v1675
        %2255 = vmatprep.subr.bf16.mxu0 %v1678
        %2256 = vmatpush1.bf16.msra.mxu0 %v1677
        %2257 = vmatprep.subr.bf16.mxu0 %v1680
        %2258 = vmatpush1.bf16.msra.mxu0 %v1679
        %2259 = vmatprep.subr.bf16.mxu0 %v1682
        %2260 = vmatpush1.bf16.msra.mxu0 %v1681
        %2261 = vmatprep.subr.bf16.mxu0 %v1684
        %2262 = vmatpush1.bf16.msra.mxu0 %v1683
        %2263 = vmatprep.subr.bf16.mxu0 %v1686
        %2264 = vmatpush1.bf16.msra.mxu0 %v1685
        %2265 = vmatprep.subr.bf16.mxu0 %v1688
        %2266 = vmatpush1.bf16.msra.mxu0 %v1687
        %2267 = vmatprep.subr.bf16.mxu0 %v1690
        %2268 = vmatpush1.bf16.msra.mxu0 %v1689
        %2269 = vmatprep.subr.bf16.mxu0 %v1692
        %2270 = vmatpush1.bf16.msra.mxu0 %v1691
        %2271 = vmatprep.subr.bf16.mxu0 %v1694
        %2272 = vmatpush1.bf16.msra.mxu0 %v1693
        %2273 = vmatprep.subr.bf16.mxu0 %v1696
        %2274 = vmatpush1.bf16.msra.mxu0 %v1695
        %2275 = vmatprep.subr.bf16.mxu0 %v1698
        %2276 = vmatpush1.bf16.msra.mxu0 %v1697
        %2277 = vmatprep.subr.bf16.mxu0 %v1700
        %2278 = vmatpush1.bf16.msra.mxu0 %v1699
        %2279 = vmatprep.subr.bf16.mxu0 %v1702
        %2280 = vmatpush1.bf16.msra.mxu0 %v1701
        %2281 = vmatprep.subr.bf16.mxu0 %v1704
        %2282 = vmatpush1.bf16.msra.mxu0 %v1703
        %2283 = vmatprep.subr.bf16.mxu0 %v1706
        %2284 = vmatpush1.bf16.msra.mxu0 %v1705
        %2285 = vmatprep.mubr.bf16.mxu0 %v696
        %2286 = vmatmul.mubr.bf16.gmra.mrb[0].mxu0 %v695
        %v2287 = vpop.f32.mrb[0].mxu0
        %v2288 = vadd.f32 %v2245, %v2287
        %v2289 = vpop.f32.mrb[0].mxu0
        %v2290 = vadd.f32 %v2247, %v2289
        %v2291 = vpop.f32.mrb[0].mxu0
        %v2292 = vadd.f32 %v2249, %v2291
        %v2293 = vpop.f32.mrb[0].mxu0
        %v2294 = vadd.f32 %v2251, %v2293
        %2295 = vdwg.mxu0
        %2296 = vmatprep.subr.bf16.mxu0 %v1708
        %2297 = vmatpush1.bf16.msra.mxu0 %v1707
        %2298 = vmatprep.subr.bf16.mxu0 %v1710
        %2299 = vmatpush1.bf16.msra.mxu0 %v1709
        %2300 = vmatprep.subr.bf16.mxu0 %v1712
        %2301 = vmatpush1.bf16.msra.mxu0 %v1711
        %2302 = vmatprep.subr.bf16.mxu0 %v1714
        %2303 = vmatpush1.bf16.msra.mxu0 %v1713
        %2304 = vmatprep.subr.bf16.mxu0 %v1716
        %2305 = vmatpush1.bf16.msra.mxu0 %v1715
        %2306 = vmatprep.subr.bf16.mxu0 %v1718
        %2307 = vmatpush1.bf16.msra.mxu0 %v1717
        %2308 = vmatprep.subr.bf16.mxu0 %v1720
        %2309 = vmatpush1.bf16.msra.mxu0 %v1719
        %2310 = vmatprep.subr.bf16.mxu0 %v1722
        %2311 = vmatpush1.bf16.msra.mxu0 %v1721
        %2312 = vmatprep.subr.bf16.mxu0 %v1724
        %2313 = vmatpush1.bf16.msra.mxu0 %v1723
        %2314 = vmatprep.subr.bf16.mxu0 %v1726
        %2315 = vmatpush1.bf16.msra.mxu0 %v1725
        %2316 = vmatprep.subr.bf16.mxu0 %v1728
        %2317 = vmatpush1.bf16.msra.mxu0 %v1727
        %2318 = vmatprep.subr.bf16.mxu0 %v1730
        %2319 = vmatpush1.bf16.msra.mxu0 %v1729
        %2320 = vmatprep.subr.bf16.mxu0 %v1732
        %2321 = vmatpush1.bf16.msra.mxu0 %v1731
        %2322 = vmatprep.subr.bf16.mxu0 %v1734
        %2323 = vmatpush1.bf16.msra.mxu0 %v1733
        %2324 = vmatprep.subr.bf16.mxu0 %v1736
        %2325 = vmatpush1.bf16.msra.mxu0 %v1735
        %2326 = vmatprep.subr.bf16.mxu0 %v1738
        %2327 = vmatpush1.bf16.msra.mxu0 %v1737
        %2328 = vmatprep.mubr.bf16.mxu0 %v698
        %2329 = vmatmul.mubr.bf16.gmra.mrb[0].mxu0 %v697
        %v2330 = vpop.f32.mrb[0].mxu0
        %v2331 = vadd.f32 %v2288, %v2330
        %v2332 = vpop.f32.mrb[0].mxu0
        %v2333 = vadd.f32 %v2290, %v2332
        %v2334 = vpop.f32.mrb[0].mxu0
        %v2335 = vadd.f32 %v2292, %v2334
        %v2336 = vpop.f32.mrb[0].mxu0
        %v2337 = vadd.f32 %v2294, %v2336
        %2338 = vdwg.mxu0
        %v2339 = vadd.f32 %v359, %v2331
        %v2340 = vadd.f32 %v360, %v2333
        %v2341 = vadd.f32 %v361, %v2335
        %v2342 = vadd.f32 %v362, %v2337
        %2343 = vst [vmem:[#allocation2] sm:$0xff] %v2339
        %2344 = vst [vmem:[#allocation2 + $0x8] sm:$0xff] %v2340
        %2345 = vst [vmem:[#allocation2 + $0x10] sm:$0xff] %v2341
        %2346 = vst [vmem:[#allocation2 + $0x18] sm:$0xff] %v2342
        // Predicated region
        $region57: #{tpu_custom_call.1} parent=35 // pred_check
          %p2347 = pneg %p351
        $region58: #{tpu_custom_call.1} parent=35 // pred_check_branch
          %2349 = sbr.rel (%p2347) target = $region60
        $region59: #{tpu_custom_call.1} parent=35 // pred_region
          %v2350 = vld [vmem:[#allocation2] sm:$0xff]
          %v2351 = vld [vmem:[#allocation2 + $0x8] sm:$0xff]
          %v2352 = vld [vmem:[#allocation2 + $0x10] sm:$0xff]
          %v2353 = vld [vmem:[#allocation2 + $0x18] sm:$0xff]
          %v2354 = vld [vmem:[%s299] sm:$0x3]
          %v2356 = vlaneseq
          %v2357 = vshrl.u32 %v2356, 7
          %v2358 = vsub.s32 0, %v2357
          %v2359 = vrot.slane %v2354, %v2358
          %v2360 = vlaneseq
          %v2361 = vshrl.u32 %v2360, 7
          %v2362 = vsub.s32 1, %v2361
          %v2363 = vrot.slane %v2354, %v2362
          %v2366 = vmul.f32 %v2350, %v2359
          %v2367 = vmul.f32 %v2351, %v2363
          %v2368 = vmul.f32 %v2352, %v2359
          %v2369 = vmul.f32 %v2353, %v2363
          %v2370 = vld [vmem:[%s308] sm:$0x3]
          %v2372 = vlaneseq
          %v2373 = vshrl.u32 %v2372, 7
          %v2374 = vsub.s32 0, %v2373
          %v2375 = vrot.slane %v2370, %v2374
          %v2376 = vlaneseq
          %v2377 = vshrl.u32 %v2376, 7
          %v2378 = vsub.s32 1, %v2377
          %v2379 = vrot.slane %v2370, %v2378
          %v2382 = vadd.f32 %v2366, %v2375
          %v2383 = vadd.f32 %v2367, %v2379
          %v2384 = vadd.f32 %v2368, %v2375
          %v2385 = vadd.f32 %v2369, %v2379
          %v2386 = vmin.f32 %v2382, 25.0
          %v2387 = vmin.f32 %v2383, 25.0
          %v2388 = vmin.f32 %v2384, 25.0
          %v2389 = vmin.f32 %v2385, 25.0
          %v2390 = vmul.f32 %v2386, 1.442695
          %v2391 = vpow.pop %v2390
          %v2392 = vmul.f32 %v2387, 1.442695
          %v2393 = vpow.pop %v2392
          %v2394 = vmul.f32 %v2388, 1.442695
          %v2395 = vpow.pop %v2394
          %v2396 = vmul.f32 %v2389, 1.442695
          %v2397 = vpow.pop %v2396
          %v2398 = vadd.f32 %v2391, 1.0
          %v2399 = vadd.f32 %v2393, 1.0
          %v2400 = vadd.f32 %v2395, 1.0
          %v2401 = vadd.f32 %v2397, 1.0
          %v2402 = vmul.f32 %v2398, %v2398
          %v2403 = vmul.f32 %v2399, %v2399
          %v2404 = vmul.f32 %v2400, %v2400
          %v2405 = vmul.f32 %v2401, %v2401
          %v2406 = vsub.f32 %v2402, 1.0
          %v2407 = vsub.f32 %v2403, 1.0
          %v2408 = vsub.f32 %v2404, 1.0
          %v2409 = vsub.f32 %v2405, 1.0
          %v2410 = vmul.f32 %v2382, %v2406
          %v2411 = vmul.f32 %v2383, %v2407
          %v2412 = vmul.f32 %v2384, %v2408
          %v2413 = vmul.f32 %v2385, %v2409
          %v2414 = vadd.f32 %v2402, 1.0
          %v2415 = vadd.f32 %v2403, 1.0
          %v2416 = vadd.f32 %v2404, 1.0
          %v2417 = vadd.f32 %v2405, 1.0
          %v2418 = vrcp.pop %v2414
          %v2419 = vrcp.pop %v2415
          %v2420 = vrcp.pop %v2416
          %v2421 = vrcp.pop %v2417
          %v2422 = vmul.f32 %v2410, %v2418
          %v2423 = vmul.f32 %v2411, %v2419
          %v2424 = vmul.f32 %v2412, %v2420
          %v2425 = vmul.f32 %v2413, %v2421
          %v2426 = vpack.c.bf16 %v2424, %v2422
          %v2427 = vpack.c.bf16 %v2425, %v2423
          %v2430 = vunpack.c.l.b16 %v2426
          %v2431 = vunpack.c.l.b16 %v2427
          %v2432 = vunpack.c.h.b16 %v2426
          %v2433 = vunpack.c.h.b16 %v2427
          %v2434 = vpack.c.b16 %v2431, %v2430
          %v2435 = vpack.c.b16 %v2433, %v2432
          %2438 = vst [vmem:[%s342] sm:$0xff] %v2434
          %2439 = vst [vmem:[%s342 + $0x8] sm:$0xff] %v2435
        $region60: #{tpu_custom_call.1} parent=35 // pred_fallthru
          _
        %s2440 = sand.u32 %s162, 1
        %s2441 = scalar_lea.sflag [#allocation5], %s2440
        %s2442 = sand.u32 %s162, 1
        %s2443 = smul.addr %s2442, 16
        %s2444 = scalar_lea.vmem [#allocation11], %s2443
        // Predicated region
        $region61: #{tpu_custom_call.1} parent=35 // pred_check
          %p2445 = pneg %p172
        $region62: #{tpu_custom_call.1} parent=35 // pred_check_branch
          %2447 = sbr.rel (%p2445) target = $region64
        $region63: #{tpu_custom_call.1} parent=35 // pred_region
          %s2448 = smul.u32 2, %s30
          %s2449 = smul.u32 2, %s31
          %s2451 = ssub.s32 256, 256
          %2452 = vsyncadd %s2441, %s2451
          %s2453 = smul.addr %s2448, 4
          %s2454 = sadd.s32 %s2449, %s2453
          %s2455 = smul.addr %s2454, 64
          %s2456 = scalar_lea.hbm %s4, %s2455
          %s2457 = sshll.u32 %s2444, 4
          %s2458 = int_to_ptr.vmem [resolvable:$true] %s2457
          %2463 = dma.vmem_to_hbm [thread:$0]  %s2458, 256, %s2456, %s2441, 128, 256, 8
        $region64: #{tpu_custom_call.1} parent=35 // pred_fallthru
          _
      $region36: #{tpu_custom_call.1} parent=5 // pred_fallthru
        _
      %p2464 = scmp.le.s32.totalorder 2, %s20
      // Predicated region
      $region65: #{tpu_custom_call.1} parent=5 // pred_check
        %p2465 = pneg %p2464
      $region66: #{tpu_custom_call.1} parent=5 // pred_check_branch
        %2467 = sbr.rel (%p2465) target = $region68
      $region67: #{tpu_custom_call.1} parent=5 // pred_region
        %s2468 = ssub.s32 %s20, 2
        // Predicated region
        $region69: #{tpu_custom_call.1} parent=67 // pred_check
          %p2469 = pneg %p178
        $region70: #{tpu_custom_call.1} parent=67 // pred_check_branch
          %2471 = sbr.rel (%p2469) target = $region72
        $region71: #{tpu_custom_call.1} parent=67 // pred_region
          %s2472 = sand.u32 %s163, 1
          %s2473 = scalar_lea.sflag [#allocation5], %s2472
          %s2474 = sand.u32 %s163, 1
          %s2475 = smul.addr %s2474, 16
          %s2476 = scalar_lea.vmem [#allocation11], %s2475
          %2477 = dma.done %s2473, 256
        $region72: #{tpu_custom_call.1} parent=67 // pred_fallthru
          _
      $region68: #{tpu_custom_call.1} parent=5 // pred_fallthru
        _
    $region6: #{tpu_custom_call.1} parent=1 // loop_footer
      %s24 = sadd.s32 1, %s20
    $region7: #{tpu_custom_call.1} parent=1 // loop_footer_branch
      %19 = sbr.rel target = $region3
    $region8: #{tpu_custom_call.1} parent=1 // loop_exit
      _
    %2478 = vsyncpa [#allocation4], 1
    %s2479 = scalar_lea.sflag [#allocation4], 1
    %2480 = vsyncpa %s2479, 1
    %2481 = vsyncpa [#allocation7], 1
    %s2482 = scalar_lea.sflag [#allocation7], 1
    %2483 = vsyncpa %s2482, 1
    %2484 = vsyncpa [#allocation10], 1
    %s2485 = scalar_lea.sflag [#allocation10], 1
    %2486 = vsyncpa %s2485, 1
    %2487 = vsyncpa [#allocation5], 1
    %s2488 = scalar_lea.sflag [#allocation5], 1
    %2489 = vsyncpa %s2488, 1

</llo_original>
